<compile_context>
chip_gen: v7x
topology: tpu7x:2x2x1
jax: 0.10.0
libtpu: 0.0.40
codegen_flags: <defaults>
</compile_context>

<pallas_src>
import jax
import jax.numpy as jnp
from jax.experimental import pallas as pl
from jax.experimental.pallas import tpu as pltpu


def _round_up(x, m):
    return ((x + m - 1) // m) * m


# ---------------------------------------------------------------------------
# Pallas kernel: 2x2 stride-1 conv (space-to-depth form of the 3x3/s2 conv)
#                + folded-BN bias + ReLU, one image per grid step.
# ---------------------------------------------------------------------------
def _make_ds_block_kernel(Ho, Wo, Wv, C4, Coutp):
    """Kernel closure over static layer geometry.

    Block shapes seen by the kernel:
      x_ref : (1, Ho+1, Wv, C4)   bf16  -- space-to-depth input, one image
      w_ref : (4, C4, Coutp)      bf16  -- taps (dh*2+dw), BN scale folded in
      b_ref : (1, Coutp)          f32   -- folded BN shift
      o_ref : (1, Ho, Wo, Coutp)  bf16
    """
    HWv = Ho * Wv

    def kernel(x_ref, w_ref, b_ref, o_ref):
        # One full-image load; Wv % 16 == 0 keeps the collapse layout-clean
        # for bf16 (packed sublanes), so this reshape is free.
        xf = x_ref[0].reshape((Ho + 1) * Wv, C4)

        # Accumulate the four 2x2 taps on the MXU (f32 accumulation).  The two
        # dw taps share the same LHS window; the dh windows are 16-aligned
        # sublane slices of xf.
        acc0 = jnp.zeros((HWv, Coutp), jnp.float32)   # dw == 0 taps
        acc1 = jnp.zeros((HWv, Coutp), jnp.float32)   # dw == 1 taps
        for dh in range(2):
            lhs = xf[dh * Wv:dh * Wv + HWv, :]
            acc0 += jnp.dot(lhs, w_ref[2 * dh + 0],
                            preferred_element_type=jnp.float32)
            acc1 += jnp.dot(lhs, w_ref[2 * dh + 1],
                            preferred_element_type=jnp.float32)

        acc0 = acc0 + b_ref[...]                      # (1, Coutp) broadcast

        # dw == 1 taps read column wo+1: apply the +1 shift on the f32
        # accumulator post-matmul (avoids unaligned bf16 sublane slices).
        a0 = acc0.reshape(Ho, Wv, Coutp)
        a1 = acc1.reshape(Ho, Wv, Coutp)
        y = a0[:, :Wo, :] + a1[:, 1:1 + Wo, :]
        o_ref[0] = jnp.maximum(y, 0.0).astype(o_ref.dtype)

    return kernel


def _ds_block_pallas(xs2d, w_taps, bias, Ho, Wo, Wv, C4, Coutp):
    N = xs2d.shape[0]
    kernel = _make_ds_block_kernel(Ho, Wo, Wv, C4, Coutp)

    cost = pl.CostEstimate(
        flops=2 * N * (Ho * Wv) * C4 * Coutp * 4,
        transcendentals=0,
        bytes_accessed=(xs2d.size * 2 + w_taps.size * 2 + bias.size * 4
                        + N * Ho * Wo * Coutp * 2),
    )

    return pl.pallas_call(
        kernel,
        out_shape=jax.ShapeDtypeStruct((N, Ho, Wo, Coutp), jnp.bfloat16),
        grid=(N,),
        in_specs=[
            pl.BlockSpec((1, Ho + 1, Wv, C4), lambda n: (n, 0, 0, 0)),  # streamed image
            pl.BlockSpec((4, C4, Coutp), lambda n: (0, 0, 0)),          # resident weights
            pl.BlockSpec((1, Coutp), lambda n: (0, 0)),                 # resident bias
        ],
        out_specs=pl.BlockSpec((1, Ho, Wo, Coutp), lambda n: (n, 0, 0, 0)),
        compiler_params=pltpu.CompilerParams(
            dimension_semantics=("parallel",),     # megacore / v7x 2-TC shardable
            vmem_limit_bytes=32 * 1024 * 1024,     # KB-scale blocks; safe on v7x 64 MiB
        ),
        cost_estimate=cost,
    )(xs2d, w_taps, bias)


# ---------------------------------------------------------------------------
# DownsampleBlock wrapper: space-to-depth + BN fold glue around the kernel
# ---------------------------------------------------------------------------
def downsample_block(x_nhwc, w_oihw, bn_gamma, bn_beta, bn_mean, bn_var, eps=1e-5):
    N, H, W, Cin = x_nhwc.shape
    Cout = w_oihw.shape[0]
    Ho = (H - 1) // 2 + 1        # conv: k=3, s=2, p=1
    Wo = (W - 1) // 2 + 1
    Wv = _round_up(Wo + 1, 16)   # s2d width: clean bf16 sublane collapse in-kernel
    Coutp = _round_up(Cout, 8)   # small sublane-friendly pad only (no 128 lane pad)
    C4 = 4 * Cin

    # Space-to-depth of the zero-padded input (block 2):
    #   xs2d[n, a, b, (ph*2+pw)*Cin + ci] == xpad[n, 2a+ph, 2b+pw, ci]
    Hp, Wp = 2 * (Ho + 1), 2 * Wv
    xb = x_nhwc.astype(jnp.bfloat16)
    xp = jnp.zeros((N, Hp, Wp, Cin), jnp.bfloat16).at[:, 1:1 + H, 1:1 + W, :].set(xb)
    xs2d = (xp.reshape(N, Ho + 1, 2, Wv, 2, Cin)
              .transpose(0, 1, 3, 2, 4, 5)
              .reshape(N, Ho + 1, Wv, C4))

    # Fold BatchNorm (eval) into the conv, repack 3x3 taps as a 2x2 conv over
    # the s2d channels.  kh = 2*dh + ph, kw = 2*dw + pw (kh/kw == 3 -> zero).
    scale = bn_gamma / jnp.sqrt(bn_var + eps)                     # (Cout,)
    b_fold = bn_beta - bn_mean * scale                            # (Cout,)
    w_hwio = jnp.transpose(w_oihw, (2, 3, 1, 0)) * scale[None, None, None, :]
    w4 = jnp.zeros((4, 4, Cin, Cout), w_hwio.dtype).at[:3, :3].set(w_hwio)
    w4 = w4.reshape(2, 2, 2, 2, Cin, Cout)                        # (dh, ph, dw, pw, ci, co)
    w2 = jnp.transpose(w4, (0, 2, 1, 3, 4, 5)).reshape(4, C4, Cout)
    w_taps = jnp.zeros((4, C4, Coutp), jnp.bfloat16).at[:, :, :Cout].set(
        w2.astype(jnp.bfloat16))
    bias = jnp.zeros((1, Coutp), jnp.float32).at[0, :Cout].set(
        b_fold.astype(jnp.float32))

    out = _ds_block_pallas(xs2d, w_taps, bias, Ho, Wo, Wv, C4, Coutp)
    return out[..., :Cout] if Coutp != Cout else out              # (N, Ho, Wo, Cout) bf16


# ---------------------------------------------------------------------------
# SimpleBackbone: sequential DownsampleBlocks over the `layers` channel list
# ---------------------------------------------------------------------------
def init_backbone_params(layers, key):
    params = []
    for cin, cout in zip(layers[:-1], layers[1:]):
        key, kw, kg, kb, km, kv = jax.random.split(key, 6)
        fan_in = cin * 9
        w = jax.random.normal(kw, (cout, cin, 3, 3), jnp.float32) * (2.0 / fan_in) ** 0.5
        gamma = jax.random.uniform(kg, (cout,), jnp.float32, minval=0.5, maxval=1.5)
        beta = jax.random.normal(kb, (cout,), jnp.float32) * 0.1
        mean = jax.random.normal(km, (cout,), jnp.float32) * 0.1
        var = jax.random.uniform(kv, (cout,), jnp.float32, minval=0.5, maxval=1.5)
        params.append((w, gamma, beta, mean, var))
    return params


def simple_backbone(x_nchw, params):
    x = jnp.transpose(x_nchw, (0, 2, 3, 1))                       # NCHW -> NHWC
    for (w, g, b, m, v) in params:
        x = downsample_block(x, w, g, b, m, v)
    return jnp.transpose(x, (0, 3, 1, 2)).astype(jnp.float32)     # NHWC -> NCHW


def reference_backbone(x_nchw, params, eps=1e-5):
    x = x_nchw
    for (w, g, b, m, v) in params:
        y = jax.lax.conv_general_dilated(
            x, w, window_strides=(2, 2), padding=((1, 1), (1, 1)),
            dimension_numbers=("NCHW", "OIHW", "NCHW"),
            precision=jax.lax.Precision.HIGHEST)
        scale = g / jnp.sqrt(v + eps)
        y = y * scale[None, :, None, None] + (b - m * scale)[None, :, None, None]
        x = jnp.maximum(y, 0.0)
    return x


if __name__ == "__main__":
    key = jax.random.PRNGKey(0)
    k_x, k_p = jax.random.split(key)

    layers = [4, 8, 16]                                            # 4->8, 8->16
    x = jax.random.normal(k_x, (2, 4, 16, 16), jnp.float32)        # NCHW
    params = init_backbone_params(layers, k_p)

    fwd = jax.jit(simple_backbone)
    out = jax.block_until_ready(fwd(x, params))                    # (2, 16, 4, 4)

    assert out.shape == (2, 16, 4, 4), out.shape
    assert out.dtype == jnp.float32

    # Sanity check vs. a plain-XLA f32 reference.  The Pallas path keeps
    # activations/weights in bf16 across two layers (f32 accumulation), so
    # use a scale-relative tolerance; real indexing/fold bugs give errors on
    # the order of the activations themselves and blow well past this.
    ref = jax.block_until_ready(jax.jit(reference_backbone)(x, params))
    max_err = float(jnp.max(jnp.abs(out - ref)))
    ref_scale = float(jnp.max(jnp.abs(ref))) + 1e-6
    assert max_err <= 0.1 * ref_scale + 0.05, (max_err, ref_scale)

    print("KERNEL_OK")
</pallas_src>

<mosaic_0001>
module attributes {stable_mosaic.version = 11 : i64} {
  func.func @kernel(%arg0: i32, %arg1: memref<1x9x16x16xbf16, #tpu.memory_space<vmem>>, %arg2: memref<4x16x8xbf16, #tpu.memory_space<vmem>>, %arg3: memref<1x8xf32, #tpu.memory_space<vmem>>, %arg4: memref<1x8x8x8xbf16, #tpu.memory_space<vmem>>) attributes {dimension_semantics = [#tpu.dimension_semantics<parallel>], iteration_bounds = array<i64: 2>, scalar_prefetch = 0 : i64, scratch_operands = 0 : i64, tpu.core_type = #tpu.core_type<tc>, window_params = [{transform_indices = @transform_0, window_bounds = array<i64: 1, 9, 16, 16>}, {pipeline_mode = #tpu.pipeline_mode<synchronous>, transform_indices = @transform_1, window_bounds = array<i64: 4, 16, 8>}, {pipeline_mode = #tpu.pipeline_mode<synchronous>, transform_indices = @transform_2, window_bounds = array<i64: 1, 8>}, {transform_indices = @transform_3, window_bounds = array<i64: 1, 8, 8, 8>}]} {
    %c0 = arith.constant 0 : index
    %c0_0 = arith.constant 0 : index
    %c0_1 = arith.constant 0 : index
    %c0_2 = arith.constant 0 : index
    %0 = vector.load %arg1[%c0, %c0_0, %c0_1, %c0_2] : memref<1x9x16x16xbf16, #tpu.memory_space<vmem>>, vector<1x9x16x16xbf16>
    %1 = vector.shape_cast %0 : vector<1x9x16x16xbf16> to vector<9x16x16xbf16>
    %2 = vector.shape_cast %1 : vector<9x16x16xbf16> to vector<144x16xbf16>
    %cst = arith.constant 0.000000e+00 : f32
    %3 = vector.broadcast %cst : f32 to vector<128x8xf32>
    %cst_3 = arith.constant 0.000000e+00 : f32
    %4 = vector.broadcast %cst_3 : f32 to vector<128x8xf32>
    %5 = vector.extract_strided_slice %2 {offsets = [0, 0], sizes = [128, 16], strides = [1, 1]} : vector<144x16xbf16> to vector<128x16xbf16>
    %c0_4 = arith.constant 0 : index
    %c0_5 = arith.constant 0 : index
    %c0_6 = arith.constant 0 : index
    %6 = vector.load %arg2[%c0_4, %c0_5, %c0_6] : memref<4x16x8xbf16, #tpu.memory_space<vmem>>, vector<1x16x8xbf16>
    %7 = vector.shape_cast %6 : vector<1x16x8xbf16> to vector<16x8xbf16>
    %cst_7 = arith.constant dense<0.000000e+00> : vector<128x8xf32>
    %8 = tpu.matmul %5, %7, %cst_7 {dimension_numbers = #tpu.dot_dimension_numbers<[1], [0], [0], [1], [0, 0, 1, 1], [], []>} : vector<128x16xbf16>, vector<16x8xbf16>, vector<128x8xf32> -> vector<128x8xf32>
    %9 = arith.addf %3, %8 : vector<128x8xf32>
    %c1 = arith.constant 1 : index
    %c0_8 = arith.constant 0 : index
    %c0_9 = arith.constant 0 : index
    %10 = vector.load %arg2[%c1, %c0_8, %c0_9] : memref<4x16x8xbf16, #tpu.memory_space<vmem>>, vector<1x16x8xbf16>
    %11 = vector.shape_cast %10 : vector<1x16x8xbf16> to vector<16x8xbf16>
    %cst_10 = arith.constant dense<0.000000e+00> : vector<128x8xf32>
    %12 = tpu.matmul %5, %11, %cst_10 {dimension_numbers = #tpu.dot_dimension_numbers<[1], [0], [0], [1], [0, 0, 1, 1], [], []>} : vector<128x16xbf16>, vector<16x8xbf16>, vector<128x8xf32> -> vector<128x8xf32>
    %13 = arith.addf %4, %12 : vector<128x8xf32>
    %14 = vector.extract_strided_slice %2 {offsets = [16, 0], sizes = [128, 16], strides = [1, 1]} : vector<144x16xbf16> to vector<128x16xbf16>
    %c2 = arith.constant 2 : index
    %c0_11 = arith.constant 0 : index
    %c0_12 = arith.constant 0 : index
    %15 = vector.load %arg2[%c2, %c0_11, %c0_12] : memref<4x16x8xbf16, #tpu.memory_space<vmem>>, vector<1x16x8xbf16>
    %16 = vector.shape_cast %15 : vector<1x16x8xbf16> to vector<16x8xbf16>
    %cst_13 = arith.constant dense<0.000000e+00> : vector<128x8xf32>
    %17 = tpu.matmul %14, %16, %cst_13 {dimension_numbers = #tpu.dot_dimension_numbers<[1], [0], [0], [1], [0, 0, 1, 1], [], []>} : vector<128x16xbf16>, vector<16x8xbf16>, vector<128x8xf32> -> vector<128x8xf32>
    %18 = arith.addf %9, %17 : vector<128x8xf32>
    %c3 = arith.constant 3 : index
    %c0_14 = arith.constant 0 : index
    %c0_15 = arith.constant 0 : index
    %19 = vector.load %arg2[%c3, %c0_14, %c0_15] : memref<4x16x8xbf16, #tpu.memory_space<vmem>>, vector<1x16x8xbf16>
    %20 = vector.shape_cast %19 : vector<1x16x8xbf16> to vector<16x8xbf16>
    %cst_16 = arith.constant dense<0.000000e+00> : vector<128x8xf32>
    %21 = tpu.matmul %14, %20, %cst_16 {dimension_numbers = #tpu.dot_dimension_numbers<[1], [0], [0], [1], [0, 0, 1, 1], [], []>} : vector<128x16xbf16>, vector<16x8xbf16>, vector<128x8xf32> -> vector<128x8xf32>
    %22 = arith.addf %13, %21 : vector<128x8xf32>
    %c0_17 = arith.constant 0 : index
    %c0_18 = arith.constant 0 : index
    %23 = vector.load %arg3[%c0_17, %c0_18] : memref<1x8xf32, #tpu.memory_space<vmem>>, vector<1x8xf32>
    %24 = vector.broadcast %23 : vector<1x8xf32> to vector<128x8xf32>
    %25 = arith.addf %18, %24 : vector<128x8xf32>
    %26 = vector.shape_cast %25 : vector<128x8xf32> to vector<8x16x8xf32>
    %27 = vector.shape_cast %22 : vector<128x8xf32> to vector<8x16x8xf32>
    %28 = vector.extract_strided_slice %26 {offsets = [0, 0, 0], sizes = [8, 8, 8], strides = [1, 1, 1]} : vector<8x16x8xf32> to vector<8x8x8xf32>
    %29 = vector.extract_strided_slice %27 {offsets = [0, 1, 0], sizes = [8, 8, 8], strides = [1, 1, 1]} : vector<8x16x8xf32> to vector<8x8x8xf32>
    %30 = arith.addf %28, %29 : vector<8x8x8xf32>
    %cst_19 = arith.constant 0.000000e+00 : f32
    %31 = vector.broadcast %cst_19 : f32 to vector<8x8x8xf32>
    %32 = arith.maximumf %30, %31 : vector<8x8x8xf32>
    %33 = arith.truncf %32 : vector<8x8x8xf32> to vector<8x8x8xbf16>
    %c0_20 = arith.constant 0 : index
    %c0_21 = arith.constant 0 : index
    %c0_22 = arith.constant 0 : index
    %c0_23 = arith.constant 0 : index
    %34 = vector.load %arg4[%c0_20, %c0_21, %c0_22, %c0_23] : memref<1x8x8x8xbf16, #tpu.memory_space<vmem>>, vector<1x8x8x8xbf16>
    %35 = vector.shape_cast %34 : vector<1x8x8x8xbf16> to vector<8x8x8xbf16>
    %36 = vector.shape_cast %33 : vector<8x8x8xbf16> to vector<1x8x8x8xbf16>
    tpu.vector_store %arg4[%c0_20, %c0_21, %c0_22, %c0_23], %36 {strides = array<i32>} : memref<1x8x8x8xbf16, #tpu.memory_space<vmem>>, vector<1x8x8x8xbf16>,
    return
  }
  func.func @transform_0(%arg0: i32) -> (i32, i32, i32, i32) {
    %c0_i32 = arith.constant 0 : i32
    %c0_i32_0 = arith.constant 0 : i32
    %c0_i32_1 = arith.constant 0 : i32
    %c0_i32_2 = arith.constant 0 : i32
    return %arg0, %c0_i32, %c0_i32_0, %c0_i32_1 : i32, i32, i32, i32
  }
  func.func @transform_1(%arg0: i32) -> (i32, i32, i32) {
    %c0_i32 = arith.constant 0 : i32
    %c0_i32_0 = arith.constant 0 : i32
    %c0_i32_1 = arith.constant 0 : i32
    %c0_i32_2 = arith.constant 0 : i32
    return %c0_i32, %c0_i32_0, %c0_i32_1 : i32, i32, i32
  }
  func.func @transform_2(%arg0: i32) -> (i32, i32) {
    %c0_i32 = arith.constant 0 : i32
    %c0_i32_0 = arith.constant 0 : i32
    %c0_i32_1 = arith.constant 0 : i32
    return %c0_i32, %c0_i32_0 : i32, i32
  }
  func.func @transform_3(%arg0: i32) -> (i32, i32, i32, i32) {
    %c0_i32 = arith.constant 0 : i32
    %c0_i32_0 = arith.constant 0 : i32
    %c0_i32_1 = arith.constant 0 : i32
    %c0_i32_2 = arith.constant 0 : i32
    return %arg0, %c0_i32, %c0_i32_0, %c0_i32_1 : i32, i32, i32, i32
  }
}

module attributes {stable_mosaic.version = 11 : i64} {
  func.func @kernel(%arg0: i32, %arg1: memref<1x5x16x32xbf16, #tpu.memory_space<vmem>>, %arg2: memref<4x32x16xbf16, #tpu.memory_space<vmem>>, %arg3: memref<1x16xf32, #tpu.memory_space<vmem>>, %arg4: memref<1x4x4x16xbf16, #tpu.memory_space<vmem>>) attributes {dimension_semantics = [#tpu.dimension_semantics<parallel>], iteration_bounds = array<i64: 2>, scalar_prefetch = 0 : i64, scratch_operands = 0 : i64, tpu.core_type = #tpu.core_type<tc>, window_params = [{transform_indices = @transform_0, window_bounds = array<i64: 1, 5, 16, 32>}, {pipeline_mode = #tpu.pipeline_mode<synchronous>, transform_indices = @transform_1, window_bounds = array<i64: 4, 32, 16>}, {pipeline_mode = #tpu.pipeline_mode<synchronous>, transform_indices = @transform_2, window_bounds = array<i64: 1, 16>}, {transform_indices = @transform_3, window_bounds = array<i64: 1, 4, 4, 16>}]} {
    %c0 = arith.constant 0 : index
    %c0_0 = arith.constant 0 : index
    %c0_1 = arith.constant 0 : index
    %c0_2 = arith.constant 0 : index
    %0 = vector.load %arg1[%c0, %c0_0, %c0_1, %c0_2] : memref<1x5x16x32xbf16, #tpu.memory_space<vmem>>, vector<1x5x16x32xbf16>
    %1 = vector.shape_cast %0 : vector<1x5x16x32xbf16> to vector<5x16x32xbf16>
    %2 = vector.shape_cast %1 : vector<5x16x32xbf16> to vector<80x32xbf16>
    %cst = arith.constant 0.000000e+00 : f32
    %3 = vector.broadcast %cst : f32 to vector<64x16xf32>
    %cst_3 = arith.constant 0.000000e+00 : f32
    %4 = vector.broadcast %cst_3 : f32 to vector<64x16xf32>
    %5 = vector.extract_strided_slice %2 {offsets = [0, 0], sizes = [64, 32], strides = [1, 1]} : vector<80x32xbf16> to vector<64x32xbf16>
    %c0_4 = arith.constant 0 : index
    %c0_5 = arith.constant 0 : index
    %c0_6 = arith.constant 0 : index
    %6 = vector.load %arg2[%c0_4, %c0_5, %c0_6] : memref<4x32x16xbf16, #tpu.memory_space<vmem>>, vector<1x32x16xbf16>
    %7 = vector.shape_cast %6 : vector<1x32x16xbf16> to vector<32x16xbf16>
    %cst_7 = arith.constant dense<0.000000e+00> : vector<64x16xf32>
    %8 = tpu.matmul %5, %7, %cst_7 {dimension_numbers = #tpu.dot_dimension_numbers<[1], [0], [0], [1], [0, 0, 1, 1], [], []>} : vector<64x32xbf16>, vector<32x16xbf16>, vector<64x16xf32> -> vector<64x16xf32>
    %9 = arith.addf %3, %8 : vector<64x16xf32>
    %c1 = arith.constant 1 : index
    %c0_8 = arith.constant 0 : index
    %c0_9 = arith.constant 0 : index
    %10 = vector.load %arg2[%c1, %c0_8, %c0_9] : memref<4x32x16xbf16, #tpu.memory_space<vmem>>, vector<1x32x16xbf16>
    %11 = vector.shape_cast %10 : vector<1x32x16xbf16> to vector<32x16xbf16>
    %cst_10 = arith.constant dense<0.000000e+00> : vector<64x16xf32>
    %12 = tpu.matmul %5, %11, %cst_10 {dimension_numbers = #tpu.dot_dimension_numbers<[1], [0], [0], [1], [0, 0, 1, 1], [], []>} : vector<64x32xbf16>, vector<32x16xbf16>, vector<64x16xf32> -> vector<64x16xf32>
    %13 = arith.addf %4, %12 : vector<64x16xf32>
    %14 = vector.extract_strided_slice %2 {offsets = [16, 0], sizes = [64, 32], strides = [1, 1]} : vector<80x32xbf16> to vector<64x32xbf16>
    %c2 = arith.constant 2 : index
    %c0_11 = arith.constant 0 : index
    %c0_12 = arith.constant 0 : index
    %15 = vector.load %arg2[%c2, %c0_11, %c0_12] : memref<4x32x16xbf16, #tpu.memory_space<vmem>>, vector<1x32x16xbf16>
    %16 = vector.shape_cast %15 : vector<1x32x16xbf16> to vector<32x16xbf16>
    %cst_13 = arith.constant dense<0.000000e+00> : vector<64x16xf32>
    %17 = tpu.matmul %14, %16, %cst_13 {dimension_numbers = #tpu.dot_dimension_numbers<[1], [0], [0], [1], [0, 0, 1, 1], [], []>} : vector<64x32xbf16>, vector<32x16xbf16>, vector<64x16xf32> -> vector<64x16xf32>
    %18 = arith.addf %9, %17 : vector<64x16xf32>
    %c3 = arith.constant 3 : index
    %c0_14 = arith.constant 0 : index
    %c0_15 = arith.constant 0 : index
    %19 = vector.load %arg2[%c3, %c0_14, %c0_15] : memref<4x32x16xbf16, #tpu.memory_space<vmem>>, vector<1x32x16xbf16>
    %20 = vector.shape_cast %19 : vector<1x32x16xbf16> to vector<32x16xbf16>
    %cst_16 = arith.constant dense<0.000000e+00> : vector<64x16xf32>
    %21 = tpu.matmul %14, %20, %cst_16 {dimension_numbers = #tpu.dot_dimension_numbers<[1], [0], [0], [1], [0, 0, 1, 1], [], []>} : vector<64x32xbf16>, vector<32x16xbf16>, vector<64x16xf32> -> vector<64x16xf32>
    %22 = arith.addf %13, %21 : vector<64x16xf32>
    %c0_17 = arith.constant 0 : index
    %c0_18 = arith.constant 0 : index
    %23 = vector.load %arg3[%c0_17, %c0_18] : memref<1x16xf32, #tpu.memory_space<vmem>>, vector<1x16xf32>
    %24 = vector.broadcast %23 : vector<1x16xf32> to vector<64x16xf32>
    %25 = arith.addf %18, %24 : vector<64x16xf32>
    %26 = vector.shape_cast %25 : vector<64x16xf32> to vector<4x16x16xf32>
    %27 = vector.shape_cast %22 : vector<64x16xf32> to vector<4x16x16xf32>
    %28 = vector.extract_strided_slice %26 {offsets = [0, 0, 0], sizes = [4, 4, 16], strides = [1, 1, 1]} : vector<4x16x16xf32> to vector<4x4x16xf32>
    %29 = vector.extract_strided_slice %27 {offsets = [0, 1, 0], sizes = [4, 4, 16], strides = [1, 1, 1]} : vector<4x16x16xf32> to vector<4x4x16xf32>
    %30 = arith.addf %28, %29 : vector<4x4x16xf32>
    %cst_19 = arith.constant 0.000000e+00 : f32
    %31 = vector.broadcast %cst_19 : f32 to vector<4x4x16xf32>
    %32 = arith.maximumf %30, %31 : vector<4x4x16xf32>
    %33 = arith.truncf %32 : vector<4x4x16xf32> to vector<4x4x16xbf16>
    %c0_20 = arith.constant 0 : index
    %c0_21 = arith.constant 0 : index
    %c0_22 = arith.constant 0 : index
    %c0_23 = arith.constant 0 : index
    %34 = vector.load %arg4[%c0_20, %c0_21, %c0_22, %c0_23] : memref<1x4x4x16xbf16, #tpu.memory_space<vmem>>, vector<1x4x4x16xbf16>
    %35 = vector.shape_cast %34 : vector<1x4x4x16xbf16> to vector<4x4x16xbf16>
    %36 = vector.shape_cast %33 : vector<4x4x16xbf16> to vector<1x4x4x16xbf16>
    tpu.vector_store %arg4[%c0_20, %c0_21, %c0_22, %c0_23], %36 {strides = array<i32>} : memref<1x4x4x16xbf16, #tpu.memory_space<vmem>>, vector<1x4x4x16xbf16>,
    return
  }
  func.func @transform_0(%arg0: i32) -> (i32, i32, i32, i32) {
    %c0_i32 = arith.constant 0 : i32
    %c0_i32_0 = arith.constant 0 : i32
    %c0_i32_1 = arith.constant 0 : i32
    %c0_i32_2 = arith.constant 0 : i32
    return %arg0, %c0_i32, %c0_i32_0, %c0_i32_1 : i32, i32, i32, i32
  }
  func.func @transform_1(%arg0: i32) -> (i32, i32, i32) {
    %c0_i32 = arith.constant 0 : i32
    %c0_i32_0 = arith.constant 0 : i32
    %c0_i32_1 = arith.constant 0 : i32
    %c0_i32_2 = arith.constant 0 : i32
    return %c0_i32, %c0_i32_0, %c0_i32_1 : i32, i32, i32
  }
  func.func @transform_2(%arg0: i32) -> (i32, i32) {
    %c0_i32 = arith.constant 0 : i32
    %c0_i32_0 = arith.constant 0 : i32
    %c0_i32_1 = arith.constant 0 : i32
    return %c0_i32, %c0_i32_0 : i32, i32
  }
  func.func @transform_3(%arg0: i32) -> (i32, i32, i32, i32) {
    %c0_i32 = arith.constant 0 : i32
    %c0_i32_0 = arith.constant 0 : i32
    %c0_i32_1 = arith.constant 0 : i32
    %c0_i32_2 = arith.constant 0 : i32
    return %arg0, %c0_i32, %c0_i32_0, %c0_i32_1 : i32, i32, i32, i32
  }
}

</mosaic_0001>

<llo_original>
// kernel: simple_backbone.2
$region0: #{simple_backbone.2}
  #allocation0 [shape = 'u32[]', space=smem, size = 0x4, offset = 0x4, fixed_abs, tag = 'smem constant byte address 0x4 - core index']
  #allocation1 [shape = 'u32[144,128]{1,0:T(1,128)}', space=vmem, size = 0x12000, scoped, tag = 'internal scratch']
  %s0 = inlined_call_operand.vmem [shape: bf16[2,9,16,16], index: 0, kind: input, shape index: {}]
  %s1 = inlined_call_operand.vmem [shape: bf16[4,16,8], index: 1, kind: input, shape index: {}]
  %s2 = inlined_call_operand.vmem [shape: f32[1,8], index: 2, kind: input, shape index: {}]
  %s3 = inlined_call_operand.vmem [shape: bf16[2,8,8,8], index: 3, kind: output, shape index: {}]
  %s4 = sld [smem:[#allocation0]]
  $region45: #{simple_backbone.2} parent=0
    _
  %s6 = ssub.s32 1, %s4
  %s7 = scalar_select 0, %s6, %s4
  loop: start=0, step=1, limit=4
  $region2: #{simple_backbone.2} parent=0 // loop_pre_header
    _
  $region3: #{simple_backbone.2} parent=0 // loop_header
    %s9 = sphi 0, %s13
    %p10 = scmp.ge.s32.totalorder %s9, 4
    %s19 = sphi 0, %s21
    %s22 = sphi 0, %s19
    %s23 = sphi 0, %s22
    %s39 = sphi 0, %s23
    %s43 = sphi 0, %s43
    %s45 = sphi 0, %s43
    %s46 = sphi 0, %s45
    %s60 = sphi 0, %s46
    %s64 = sphi 0, %s64
    %s66 = sphi 0, %s64
    %s67 = sphi 0, %s66
    %s81 = sphi 0, %s67
    %s87 = sphi 0, %s89
    %s90 = sphi 0, %s87
    %s91 = sphi 0, %s90
    %s107 = sphi 0, %s91
  $region4: #{simple_backbone.2} parent=0 // loop_header_branch
    %12 = sbr.rel (%p10) target = $region8
  $region5: #{simple_backbone.2} parent=0 // loop_body
    %s14 = ssub.s32 %s9, 1
    %s15 = ssub.s32 %s9, 2
    %s16 = sadd.s32 %s9, 1
    %s17 = ssub.s32 %s9, %s16
    %p18 = scmp.eq.s32.totalorder %s17, 0
    %s20 = sadd.s32 %s19, 1
    %s21 = scalar_select %p18, %s19, %s20
    %p24 = pneg %p18
    %p25 = scmp.eq.s32.totalorder %s9, 1
    %p26 = por %p24, %p25
    %p27 = scmp.ne.s32.totalorder %s19, %s22
    %p28 = scmp.eq.s32.totalorder %s9, 0
    %p29 = por %p27, %p28
    %p30 = scmp.ne.s32.totalorder %s19, %s22
    %p31 = scmp.eq.s32.totalorder %s14, 1
    %p32 = por %p30, %p31
    %p33 = scmp.ne.s32.totalorder %s22, %s23
    %p34 = scmp.eq.s32.totalorder %s14, 0
    %p35 = por %p33, %p34
    %p36 = scmp.ne.s32.totalorder %s22, %s23
    %p37 = scmp.eq.s32.totalorder %s15, 1
    %p38 = por %p36, %p37
    %p40 = scmp.ne.s32.totalorder %s23, %s39
    %p41 = scmp.eq.s32.totalorder %s15, 0
    %p42 = por %p40, %p41
    %s44 = sadd.s32 %s43, 1
    %p47 = scmp.eq.s32.totalorder %s9, 1
    %p48 = scmp.ne.s32.totalorder %s43, %s45
    %p49 = scmp.eq.s32.totalorder %s9, 0
    %p50 = por %p48, %p49
    %p51 = scmp.ne.s32.totalorder %s43, %s45
    %p52 = scmp.eq.s32.totalorder %s14, 1
    %p53 = por %p51, %p52
    %p54 = scmp.ne.s32.totalorder %s45, %s46
    %p55 = scmp.eq.s32.totalorder %s14, 0
    %p56 = por %p54, %p55
    %p57 = scmp.ne.s32.totalorder %s45, %s46
    %p58 = scmp.eq.s32.totalorder %s15, 1
    %p59 = por %p57, %p58
    %p61 = scmp.ne.s32.totalorder %s46, %s60
    %p62 = scmp.eq.s32.totalorder %s15, 0
    %p63 = por %p61, %p62
    %s65 = sadd.s32 %s64, 1
    %p68 = scmp.eq.s32.totalorder %s9, 1
    %p69 = scmp.ne.s32.totalorder %s64, %s66
    %p70 = scmp.eq.s32.totalorder %s9, 0
    %p71 = por %p69, %p70
    %p72 = scmp.ne.s32.totalorder %s64, %s66
    %p73 = scmp.eq.s32.totalorder %s14, 1
    %p74 = por %p72, %p73
    %p75 = scmp.ne.s32.totalorder %s66, %s67
    %p76 = scmp.eq.s32.totalorder %s14, 0
    %p77 = por %p75, %p76
    %p78 = scmp.ne.s32.totalorder %s66, %s67
    %p79 = scmp.eq.s32.totalorder %s15, 1
    %p80 = por %p78, %p79
    %p82 = scmp.ne.s32.totalorder %s67, %s81
    %p83 = scmp.eq.s32.totalorder %s15, 0
    %p84 = por %p82, %p83
    %s85 = ssub.s32 %s9, %s16
    %p86 = scmp.eq.s32.totalorder %s85, 0
    %s88 = sadd.s32 %s87, 1
    %s89 = scalar_select %p86, %s87, %s88
    %p92 = pneg %p86
    %p93 = scmp.eq.s32.totalorder %s9, 1
    %p94 = por %p92, %p93
    %p95 = scmp.ne.s32.totalorder %s87, %s90
    %p96 = scmp.eq.s32.totalorder %s9, 0
    %p97 = por %p95, %p96
    %p98 = scmp.ne.s32.totalorder %s87, %s90
    %p99 = scmp.eq.s32.totalorder %s14, 1
    %p100 = por %p98, %p99
    %p101 = scmp.ne.s32.totalorder %s90, %s91
    %p102 = scmp.eq.s32.totalorder %s14, 0
    %p103 = por %p101, %p102
    %p104 = scmp.ne.s32.totalorder %s90, %s91
    %p105 = scmp.eq.s32.totalorder %s15, 1
    %p106 = por %p104, %p105
    %p108 = scmp.ne.s32.totalorder %s91, %s107
    %p109 = scmp.eq.s32.totalorder %s15, 0
    %p110 = por %p108, %p109
    %p111 = scmp.le.s32.totalorder 1, %s9
    %p112 = scmp.lt.s32.totalorder %s9, 3
    %p113 = pnand %p111, %p112
    %p114 = pneg %p113
    // Predicated region
    $region9: #{simple_backbone.2} parent=5 // pred_check
      _
    $region10: #{simple_backbone.2} parent=5 // pred_check_branch
      %116 = sbr.rel (%p113) target = $region12
    $region11: #{simple_backbone.2} parent=5 // pred_region
      %s117 = ssub.s32 %s9, 1
      // Predicated region
      $region13: #{simple_backbone.2} parent=11 // pred_check
        %p118 = pneg %p56
      $region14: #{simple_backbone.2} parent=11 // pred_check_branch
        %120 = sbr.rel (%p118) target = $region16
      $region15: #{simple_backbone.2} parent=11 // pred_region
        _
      $region16: #{simple_backbone.2} parent=11 // pred_fallthru
        _
      // Predicated region
      $region17: #{simple_backbone.2} parent=11 // pred_check
        %p121 = pneg %p77
      $region18: #{simple_backbone.2} parent=11 // pred_check_branch
        %123 = sbr.rel (%p121) target = $region20
      $region19: #{simple_backbone.2} parent=11 // pred_region
        _
      $region20: #{simple_backbone.2} parent=11 // pred_fallthru
        _
    $region12: #{simple_backbone.2} parent=5 // pred_fallthru
      _
    %p124 = scmp.lt.s32.totalorder %s9, 2
    // Predicated region
    $region21: #{simple_backbone.2} parent=5 // pred_check
      %p125 = pneg %p124
    $region22: #{simple_backbone.2} parent=5 // pred_check_branch
      %127 = sbr.rel (%p125) target = $region24
    $region23: #{simple_backbone.2} parent=5 // pred_region
      // Predicated region
      $region25: #{simple_backbone.2} parent=23 // pred_check
        %p128 = pneg %p29
      $region26: #{simple_backbone.2} parent=23 // pred_check_branch
        %130 = sbr.rel (%p128) target = $region28
      $region27: #{simple_backbone.2} parent=23 // pred_region
        %p131 = scmp.lt.s32.totalorder %s9, 1
        %s132 = scalar_select %p131, %s9, 1
        %s133 = smul.addr %s132, 18
        %s134 = smul.addr %s133, 4
        %s135 = scalar_lea.vmem %s0, %s134
      $region28: #{simple_backbone.2} parent=23 // pred_fallthru
        _
    $region24: #{simple_backbone.2} parent=5 // pred_fallthru
      _
    %p136 = scmp.le.s32.totalorder 1, %s9
    %p137 = scmp.lt.s32.totalorder %s9, 3
    %p138 = pnand %p136, %p137
    %p139 = pneg %p138
    // Predicated region
    $region29: #{simple_backbone.2} parent=5 // pred_check
      _
    $region30: #{simple_backbone.2} parent=5 // pred_check_branch
      %141 = sbr.rel (%p138) target = $region32
    $region31: #{simple_backbone.2} parent=5 // pred_region
      %s142 = ssub.s32 %s9, 1
      %p143 = scmp.lt.s32.totalorder %s14, 1
      %s144 = scalar_select %p143, %s14, 1
      %s145 = smul.addr %s144, 18
      %s146 = smul.addr %s145, 4
      %s147 = scalar_lea.vmem %s0, %s146
      %p148 = pneg %p35
      %p149 = pneg %p32
      %p150 = pneg %p56
      %p151 = pneg %p53
      %p152 = pneg %p77
      %p153 = pneg %p74
      %p154 = pneg %p103
      %p155 = pneg %p100
      %p156 = scmp.lt.s32.totalorder %s14, 1
      %s157 = scalar_select %p156, %s14, 1
      %s158 = smul.addr %s157, 8
      %s159 = smul.addr %s158, 4
      %s160 = scalar_lea.vmem %s3, %s159
      %p161 = scmp.lt.s32.totalorder %s14, 1
      %s162 = scalar_select %p161, %s14, 1
      %s163 = smul.addr %s162, 18
      %s164 = smul.addr %s163, 4
      %s165 = scalar_lea.vmem %s0, %s164
      %p166 = scmp.lt.s32.totalorder %s14, 1
      %s167 = scalar_select %p166, %s14, 1
      %s168 = smul.addr %s167, 8
      %s169 = smul.addr %s168, 4
      %s170 = scalar_lea.vmem %s3, %s169
      %v172 = vld [vmem:[%s165] sm:$0xf]
      %v173 = vld [vmem:[%s165 + $0x4] sm:$0xf]
      %v174 = vld [vmem:[%s165 + $0x8] sm:$0xf]
      %v175 = vld [vmem:[%s165 + $0xc] sm:$0xf]
      %v176 = vld [vmem:[%s165 + $0x10] sm:$0xf]
      %v177 = vld [vmem:[%s165 + $0x14] sm:$0xf]
      %v178 = vld [vmem:[%s165 + $0x18] sm:$0xf]
      %v179 = vld [vmem:[%s165 + $0x1c] sm:$0xf]
      %v180 = vld [vmem:[%s165 + $0x20] sm:$0xf]
      %v181 = vld [vmem:[%s165 + $0x24] sm:$0xf]
      %v182 = vld [vmem:[%s165 + $0x28] sm:$0xf]
      %v183 = vld [vmem:[%s165 + $0x2c] sm:$0xf]
      %v184 = vld [vmem:[%s165 + $0x30] sm:$0xf]
      %v185 = vld [vmem:[%s165 + $0x34] sm:$0xf]
      %v186 = vld [vmem:[%s165 + $0x38] sm:$0xf]
      %v187 = vld [vmem:[%s165 + $0x3c] sm:$0xf]
      %v188 = vld [vmem:[%s165 + $0x40] sm:$0xf]
      %v189 = vld [vmem:[%s165 + $0x44] sm:$0xf]
      %v190 = vld [vmem:[%s1] sm:$0xf]
      %v191 = vld [vmem:[%s1 + $0x4] sm:$0xf]
      %s192 = scalar_lea.vmem %s1, 8
      %v193 = vld [vmem:[%s192] sm:$0xf]
      %v194 = vld [vmem:[%s192 + $0x4] sm:$0xf]
      %s195 = scalar_lea.vmem %s1, 16
      %v196 = vld [vmem:[%s195] sm:$0xf]
      %v197 = vld [vmem:[%s195 + $0x4] sm:$0xf]
      %v214 = vunpack.c.l.b16 %v174
      %v215 = vunpack.c.l.b16 %v175
      %v216 = vunpack.c.l.b16 %v176
      %v217 = vunpack.c.l.b16 %v177
      %v218 = vunpack.c.l.b16 %v178
      %v219 = vunpack.c.l.b16 %v179
      %v220 = vunpack.c.l.b16 %v180
      %v221 = vunpack.c.l.b16 %v181
      %v222 = vunpack.c.l.b16 %v182
      %v223 = vunpack.c.l.b16 %v183
      %v224 = vunpack.c.l.b16 %v184
      %v225 = vunpack.c.l.b16 %v185
      %v226 = vunpack.c.l.b16 %v186
      %v227 = vunpack.c.l.b16 %v187
      %v228 = vunpack.c.l.b16 %v188
      %v229 = vunpack.c.l.b16 %v189
      %v230 = vpack.c.b16 %v215, %v214
      %v231 = vpack.c.b16 %v217, %v216
      %v232 = vpack.c.b16 %v219, %v218
      %v233 = vpack.c.b16 %v221, %v220
      %v234 = vpack.c.b16 %v223, %v222
      %v235 = vpack.c.b16 %v225, %v224
      %v236 = vpack.c.b16 %v227, %v226
      %v237 = vpack.c.b16 %v229, %v228
      %v240 = vunpack.c.l.b16 %v196
      %v241 = vunpack.c.l.b16 %v197
      %v242 = vpack.c.b16 %v241, %v240
      %vm244 = vcmask 130048
      %v246 = vsel %vm244, %v230, 0
      %v249 = vsel %vm244, %v231, 0
      %v252 = vsel %vm244, %v232, 0
      %v255 = vsel %vm244, %v233, 0
      %v258 = vsel %vm244, %v234, 0
      %v261 = vsel %vm244, %v235, 0
      %v264 = vsel %vm244, %v236, 0
      %v267 = vsel %vm244, %v237, 0
      %269 = vmatprep.subr.bf16.mxu0 0
      %270 = vmatpush1.bf16.msra.mxu0 %v242
      %271 = vmatprep.subr.bf16.mxu0 0
      %272 = vmatpush1.bf16.msra.mxu0 0
      %273 = vmatprep.subr.bf16.mxu0 0
      %274 = vmatpush1.bf16.msra.mxu0 0
      %275 = vmatprep.subr.bf16.mxu0 0
      %276 = vmatpush1.bf16.msra.mxu0 0
      %277 = vmatprep.subr.bf16.mxu0 0
      %278 = vmatpush1.bf16.msra.mxu0 0
      %279 = vmatprep.subr.bf16.mxu0 0
      %280 = vmatpush1.bf16.msra.mxu0 0
      %281 = vmatprep.subr.bf16.mxu0 0
      %282 = vmatpush1.bf16.msra.mxu0 0
      %283 = vmatprep.subr.bf16.mxu0 0
      %284 = vmatpush1.bf16.msra.mxu0 0
      %285 = vmatprep.subr.bf16.mxu0 0
      %286 = vmatpush1.bf16.msra.mxu0 0
      %287 = vmatprep.subr.bf16.mxu0 0
      %288 = vmatpush1.bf16.msra.mxu0 0
      %289 = vmatprep.subr.bf16.mxu0 0
      %290 = vmatpush1.bf16.msra.mxu0 0
      %291 = vmatprep.subr.bf16.mxu0 0
      %292 = vmatpush1.bf16.msra.mxu0 0
      %293 = vmatprep.subr.bf16.mxu0 0
      %294 = vmatpush1.bf16.msra.mxu0 0
      %295 = vmatprep.subr.bf16.mxu0 0
      %296 = vmatpush1.bf16.msra.mxu0 0
      %297 = vmatprep.subr.bf16.mxu0 0
      %298 = vmatpush1.bf16.msra.mxu0 0
      %299 = vmatprep.subr.bf16.mxu0 0
      %300 = vmatpush1.bf16.msra.mxu0 0
      %301 = vmatprep.mubr.bf16.mxu0 0
      %302 = vmatmul.mubr.bf16.gmra.mrb[0].mxu0 %v246
      %v303 = vpop.f32.mrb[0].mxu0
      %v304 = vadd.f32 0.0, %v303
      %v305 = vpop.f32.mrb[0].mxu0
      %v306 = vpop.f32.mrb[0].mxu0
      %v307 = vpop.f32.mrb[0].mxu0
      %308 = vmatprep.mubr.bf16.mxu0 0
      %309 = vmatmul.mubr.bf16.gmra.mrb[0].mxu0 %v249
      %v310 = vpop.f32.mrb[0].mxu0
      %v311 = vadd.f32 0.0, %v310
      %v312 = vpop.f32.mrb[0].mxu0
      %v313 = vpop.f32.mrb[0].mxu0
      %v314 = vpop.f32.mrb[0].mxu0
      %315 = vmatprep.mubr.bf16.mxu0 0
      %316 = vmatmul.mubr.bf16.gmra.mrb[0].mxu0 %v252
      %v317 = vpop.f32.mrb[0].mxu0
      %v318 = vadd.f32 0.0, %v317
      %v319 = vpop.f32.mrb[0].mxu0
      %v320 = vpop.f32.mrb[0].mxu0
      %v321 = vpop.f32.mrb[0].mxu0
      %322 = vmatprep.mubr.bf16.mxu0 0
      %323 = vmatmul.mubr.bf16.gmra.mrb[0].mxu0 %v255
      %v324 = vpop.f32.mrb[0].mxu0
      %v325 = vadd.f32 0.0, %v324
      %v326 = vpop.f32.mrb[0].mxu0
      %v327 = vpop.f32.mrb[0].mxu0
      %v328 = vpop.f32.mrb[0].mxu0
      %329 = vmatprep.mubr.bf16.mxu0 0
      %330 = vmatmul.mubr.bf16.gmra.mrb[0].mxu0 %v258
      %v331 = vpop.f32.mrb[0].mxu0
      %v332 = vadd.f32 0.0, %v331
      %v333 = vpop.f32.mrb[0].mxu0
      %v334 = vpop.f32.mrb[0].mxu0
      %v335 = vpop.f32.mrb[0].mxu0
      %336 = vmatprep.mubr.bf16.mxu0 0
      %337 = vmatmul.mubr.bf16.gmra.mrb[0].mxu0 %v261
      %v338 = vpop.f32.mrb[0].mxu0
      %v339 = vadd.f32 0.0, %v338
      %v340 = vpop.f32.mrb[0].mxu0
      %v341 = vpop.f32.mrb[0].mxu0
      %v342 = vpop.f32.mrb[0].mxu0
      %343 = vmatprep.mubr.bf16.mxu0 0
      %344 = vmatmul.mubr.bf16.gmra.mrb[0].mxu0 %v264
      %v345 = vpop.f32.mrb[0].mxu0
      %v346 = vadd.f32 0.0, %v345
      %v347 = vpop.f32.mrb[0].mxu0
      %v348 = vpop.f32.mrb[0].mxu0
      %v349 = vpop.f32.mrb[0].mxu0
      %350 = vmatprep.mubr.bf16.mxu0 0
      %351 = vmatmul.mubr.bf16.gmra.mrb[0].mxu0 %v267
      %v352 = vpop.f32.mrb[0].mxu0
      %v353 = vadd.f32 0.0, %v352
      %v354 = vpop.f32.mrb[0].mxu0
      %v355 = vpop.f32.mrb[0].mxu0
      %v356 = vpop.f32.mrb[0].mxu0
      %357 = vdwg.mxu0
      %v360 = vunpack.c.l.b16 %v172
      %v361 = vunpack.c.l.b16 %v173
      %v362 = vpack.c.b16 %v361, %v360
      %v365 = vunpack.c.l.b16 %v190
      %v366 = vunpack.c.l.b16 %v191
      %v367 = vpack.c.b16 %v366, %v365
      %v370 = vsel %vm244, %v362, 0
      %372 = vmatprep.subr.bf16.mxu0 0
      %373 = vmatpush1.bf16.msra.mxu0 %v367
      %374 = vmatprep.subr.bf16.mxu0 0
      %375 = vmatpush1.bf16.msra.mxu0 0
      %376 = vmatprep.subr.bf16.mxu0 0
      %377 = vmatpush1.bf16.msra.mxu0 0
      %378 = vmatprep.subr.bf16.mxu0 0
      %379 = vmatpush1.bf16.msra.mxu0 0
      %380 = vmatprep.subr.bf16.mxu0 0
      %381 = vmatpush1.bf16.msra.mxu0 0
      %382 = vmatprep.subr.bf16.mxu0 0
      %383 = vmatpush1.bf16.msra.mxu0 0
      %384 = vmatprep.subr.bf16.mxu0 0
      %385 = vmatpush1.bf16.msra.mxu0 0
      %386 = vmatprep.subr.bf16.mxu0 0
      %387 = vmatpush1.bf16.msra.mxu0 0
      %388 = vmatprep.subr.bf16.mxu0 0
      %389 = vmatpush1.bf16.msra.mxu0 0
      %390 = vmatprep.subr.bf16.mxu0 0
      %391 = vmatpush1.bf16.msra.mxu0 0
      %392 = vmatprep.subr.bf16.mxu0 0
      %393 = vmatpush1.bf16.msra.mxu0 0
      %394 = vmatprep.subr.bf16.mxu0 0
      %395 = vmatpush1.bf16.msra.mxu0 0
      %396 = vmatprep.subr.bf16.mxu0 0
      %397 = vmatpush1.bf16.msra.mxu0 0
      %398 = vmatprep.subr.bf16.mxu0 0
      %399 = vmatpush1.bf16.msra.mxu0 0
      %400 = vmatprep.subr.bf16.mxu0 0
      %401 = vmatpush1.bf16.msra.mxu0 0
      %402 = vmatprep.subr.bf16.mxu0 0
      %403 = vmatpush1.bf16.msra.mxu0 0
      %404 = vmatprep.mubr.bf16.mxu0 0
      %405 = vmatmul.mubr.bf16.gmra.mrb[0].mxu0 %v370
      %v406 = vpop.f32.mrb[0].mxu0
      %v407 = vadd.f32 %v304, %v406
      %v408 = vpop.f32.mrb[0].mxu0
      %v409 = vpop.f32.mrb[0].mxu0
      %v410 = vpop.f32.mrb[0].mxu0
      %411 = vmatprep.mubr.bf16.mxu0 0
      %412 = vmatmul.mubr.bf16.gmra.mrb[0].mxu0 %v246
      %v413 = vpop.f32.mrb[0].mxu0
      %v414 = vadd.f32 %v311, %v413
      %v415 = vpop.f32.mrb[0].mxu0
      %v416 = vpop.f32.mrb[0].mxu0
      %v417 = vpop.f32.mrb[0].mxu0
      %418 = vmatprep.mubr.bf16.mxu0 0
      %419 = vmatmul.mubr.bf16.gmra.mrb[0].mxu0 %v249
      %v420 = vpop.f32.mrb[0].mxu0
      %v421 = vadd.f32 %v318, %v420
      %v422 = vpop.f32.mrb[0].mxu0
      %v423 = vpop.f32.mrb[0].mxu0
      %v424 = vpop.f32.mrb[0].mxu0
      %425 = vmatprep.mubr.bf16.mxu0 0
      %426 = vmatmul.mubr.bf16.gmra.mrb[0].mxu0 %v252
      %v427 = vpop.f32.mrb[0].mxu0
      %v428 = vadd.f32 %v325, %v427
      %v429 = vpop.f32.mrb[0].mxu0
      %v430 = vpop.f32.mrb[0].mxu0
      %v431 = vpop.f32.mrb[0].mxu0
      %432 = vmatprep.mubr.bf16.mxu0 0
      %433 = vmatmul.mubr.bf16.gmra.mrb[0].mxu0 %v255
      %v434 = vpop.f32.mrb[0].mxu0
      %v435 = vadd.f32 %v332, %v434
      %v436 = vpop.f32.mrb[0].mxu0
      %v437 = vpop.f32.mrb[0].mxu0
      %v438 = vpop.f32.mrb[0].mxu0
      %439 = vmatprep.mubr.bf16.mxu0 0
      %440 = vmatmul.mubr.bf16.gmra.mrb[0].mxu0 %v258
      %v441 = vpop.f32.mrb[0].mxu0
      %v442 = vadd.f32 %v339, %v441
      %v443 = vpop.f32.mrb[0].mxu0
      %v444 = vpop.f32.mrb[0].mxu0
      %v445 = vpop.f32.mrb[0].mxu0
      %446 = vmatprep.mubr.bf16.mxu0 0
      %447 = vmatmul.mubr.bf16.gmra.mrb[0].mxu0 %v261
      %v448 = vpop.f32.mrb[0].mxu0
      %v449 = vadd.f32 %v346, %v448
      %v450 = vpop.f32.mrb[0].mxu0
      %v451 = vpop.f32.mrb[0].mxu0
      %v452 = vpop.f32.mrb[0].mxu0
      %453 = vmatprep.mubr.bf16.mxu0 0
      %454 = vmatmul.mubr.bf16.gmra.mrb[0].mxu0 %v264
      %v455 = vpop.f32.mrb[0].mxu0
      %v456 = vadd.f32 %v353, %v455
      %v457 = vpop.f32.mrb[0].mxu0
      %v458 = vpop.f32.mrb[0].mxu0
      %v459 = vpop.f32.mrb[0].mxu0
      %460 = vdwg.mxu0
      %s461 = scalar_lea.vmem %s1, 24
      %v462 = vld [vmem:[%s461] sm:$0xf]
      %v463 = vld [vmem:[%s461 + $0x4] sm:$0xf]
      %v466 = vunpack.c.l.b16 %v462
      %v467 = vunpack.c.l.b16 %v463
      %v468 = vpack.c.b16 %v467, %v466
      %470 = vmatprep.subr.bf16.mxu0 0
      %471 = vmatpush1.bf16.msra.mxu0 %v468
      %472 = vmatprep.subr.bf16.mxu0 0
      %473 = vmatpush1.bf16.msra.mxu0 0
      %474 = vmatprep.subr.bf16.mxu0 0
      %475 = vmatpush1.bf16.msra.mxu0 0
      %476 = vmatprep.subr.bf16.mxu0 0
      %477 = vmatpush1.bf16.msra.mxu0 0
      %478 = vmatprep.subr.bf16.mxu0 0
      %479 = vmatpush1.bf16.msra.mxu0 0
      %480 = vmatprep.subr.bf16.mxu0 0
      %481 = vmatpush1.bf16.msra.mxu0 0
      %482 = vmatprep.subr.bf16.mxu0 0
      %483 = vmatpush1.bf16.msra.mxu0 0
      %484 = vmatprep.subr.bf16.mxu0 0
      %485 = vmatpush1.bf16.msra.mxu0 0
      %486 = vmatprep.subr.bf16.mxu0 0
      %487 = vmatpush1.bf16.msra.mxu0 0
      %488 = vmatprep.subr.bf16.mxu0 0
      %489 = vmatpush1.bf16.msra.mxu0 0
      %490 = vmatprep.subr.bf16.mxu0 0
      %491 = vmatpush1.bf16.msra.mxu0 0
      %492 = vmatprep.subr.bf16.mxu0 0
      %493 = vmatpush1.bf16.msra.mxu0 0
      %494 = vmatprep.subr.bf16.mxu0 0
      %495 = vmatpush1.bf16.msra.mxu0 0
      %496 = vmatprep.subr.bf16.mxu0 0
      %497 = vmatpush1.bf16.msra.mxu0 0
      %498 = vmatprep.subr.bf16.mxu0 0
      %499 = vmatpush1.bf16.msra.mxu0 0
      %500 = vmatprep.subr.bf16.mxu0 0
      %501 = vmatpush1.bf16.msra.mxu0 0
      %502 = vmatprep.mubr.bf16.mxu0 0
      %503 = vmatmul.mubr.bf16.gmra.mrb[0].mxu0 %v246
      %v504 = vpop.f32.mrb[0].mxu0
      %v505 = vadd.f32 0.0, %v504
      %v506 = vpop.f32.mrb[0].mxu0
      %v507 = vpop.f32.mrb[0].mxu0
      %v508 = vadd.f32 0.0, %v507
      %v509 = vpop.f32.mrb[0].mxu0
      %510 = vmatprep.mubr.bf16.mxu0 0
      %511 = vmatmul.mubr.bf16.gmra.mrb[0].mxu0 %v249
      %v512 = vpop.f32.mrb[0].mxu0
      %v513 = vadd.f32 0.0, %v512
      %v514 = vpop.f32.mrb[0].mxu0
      %v515 = vpop.f32.mrb[0].mxu0
      %v516 = vadd.f32 0.0, %v515
      %v517 = vpop.f32.mrb[0].mxu0
      %518 = vmatprep.mubr.bf16.mxu0 0
      %519 = vmatmul.mubr.bf16.gmra.mrb[0].mxu0 %v252
      %v520 = vpop.f32.mrb[0].mxu0
      %v521 = vadd.f32 0.0, %v520
      %v522 = vpop.f32.mrb[0].mxu0
      %v523 = vpop.f32.mrb[0].mxu0
      %v524 = vadd.f32 0.0, %v523
      %v525 = vpop.f32.mrb[0].mxu0
      %526 = vmatprep.mubr.bf16.mxu0 0
      %527 = vmatmul.mubr.bf16.gmra.mrb[0].mxu0 %v255
      %v528 = vpop.f32.mrb[0].mxu0
      %v529 = vadd.f32 0.0, %v528
      %v530 = vpop.f32.mrb[0].mxu0
      %v531 = vpop.f32.mrb[0].mxu0
      %v532 = vadd.f32 0.0, %v531
      %v533 = vpop.f32.mrb[0].mxu0
      %534 = vmatprep.mubr.bf16.mxu0 0
      %535 = vmatmul.mubr.bf16.gmra.mrb[0].mxu0 %v258
      %v536 = vpop.f32.mrb[0].mxu0
      %v537 = vadd.f32 0.0, %v536
      %v538 = vpop.f32.mrb[0].mxu0
      %v539 = vpop.f32.mrb[0].mxu0
      %v540 = vadd.f32 0.0, %v539
      %v541 = vpop.f32.mrb[0].mxu0
      %542 = vmatprep.mubr.bf16.mxu0 0
      %543 = vmatmul.mubr.bf16.gmra.mrb[0].mxu0 %v261
      %v544 = vpop.f32.mrb[0].mxu0
      %v545 = vadd.f32 0.0, %v544
      %v546 = vpop.f32.mrb[0].mxu0
      %v547 = vpop.f32.mrb[0].mxu0
      %v548 = vadd.f32 0.0, %v547
      %v549 = vpop.f32.mrb[0].mxu0
      %550 = vmatprep.mubr.bf16.mxu0 0
      %551 = vmatmul.mubr.bf16.gmra.mrb[0].mxu0 %v264
      %v552 = vpop.f32.mrb[0].mxu0
      %v553 = vadd.f32 0.0, %v552
      %v554 = vpop.f32.mrb[0].mxu0
      %v555 = vpop.f32.mrb[0].mxu0
      %v556 = vadd.f32 0.0, %v555
      %v557 = vpop.f32.mrb[0].mxu0
      %558 = vmatprep.mubr.bf16.mxu0 0
      %559 = vmatmul.mubr.bf16.gmra.mrb[0].mxu0 %v267
      %v560 = vpop.f32.mrb[0].mxu0
      %v561 = vadd.f32 0.0, %v560
      %v562 = vpop.f32.mrb[0].mxu0
      %v563 = vpop.f32.mrb[0].mxu0
      %v564 = vadd.f32 0.0, %v563
      %v565 = vpop.f32.mrb[0].mxu0
      %566 = vdwg.mxu0
      %v569 = vunpack.c.l.b16 %v193
      %v570 = vunpack.c.l.b16 %v194
      %v571 = vpack.c.b16 %v570, %v569
      %573 = vmatprep.subr.bf16.mxu0 0
      %574 = vmatpush1.bf16.msra.mxu0 %v571
      %575 = vmatprep.subr.bf16.mxu0 0
      %576 = vmatpush1.bf16.msra.mxu0 0
      %577 = vmatprep.subr.bf16.mxu0 0
      %578 = vmatpush1.bf16.msra.mxu0 0
      %579 = vmatprep.subr.bf16.mxu0 0
      %580 = vmatpush1.bf16.msra.mxu0 0
      %581 = vmatprep.subr.bf16.mxu0 0
      %582 = vmatpush1.bf16.msra.mxu0 0
      %583 = vmatprep.subr.bf16.mxu0 0
      %584 = vmatpush1.bf16.msra.mxu0 0
      %585 = vmatprep.subr.bf16.mxu0 0
      %586 = vmatpush1.bf16.msra.mxu0 0
      %587 = vmatprep.subr.bf16.mxu0 0
      %588 = vmatpush1.bf16.msra.mxu0 0
      %589 = vmatprep.subr.bf16.mxu0 0
      %590 = vmatpush1.bf16.msra.mxu0 0
      %591 = vmatprep.subr.bf16.mxu0 0
      %592 = vmatpush1.bf16.msra.mxu0 0
      %593 = vmatprep.subr.bf16.mxu0 0
      %594 = vmatpush1.bf16.msra.mxu0 0
      %595 = vmatprep.subr.bf16.mxu0 0
      %596 = vmatpush1.bf16.msra.mxu0 0
      %597 = vmatprep.subr.bf16.mxu0 0
      %598 = vmatpush1.bf16.msra.mxu0 0
      %599 = vmatprep.subr.bf16.mxu0 0
      %600 = vmatpush1.bf16.msra.mxu0 0
      %601 = vmatprep.subr.bf16.mxu0 0
      %602 = vmatpush1.bf16.msra.mxu0 0
      %603 = vmatprep.subr.bf16.mxu0 0
      %604 = vmatpush1.bf16.msra.mxu0 0
      %605 = vmatprep.mubr.bf16.mxu0 0
      %606 = vmatmul.mubr.bf16.gmra.mrb[0].mxu0 %v370
      %v607 = vpop.f32.mrb[0].mxu0
      %v608 = vadd.f32 %v505, %v607
      %v609 = vpop.f32.mrb[0].mxu0
      %v610 = vpop.f32.mrb[0].mxu0
      %v611 = vadd.f32 %v508, %v610
      %v612 = vpop.f32.mrb[0].mxu0
      %613 = vmatprep.mubr.bf16.mxu0 0
      %614 = vmatmul.mubr.bf16.gmra.mrb[0].mxu0 %v246
      %v615 = vpop.f32.mrb[0].mxu0
      %v616 = vadd.f32 %v513, %v615
      %v617 = vpop.f32.mrb[0].mxu0
      %v618 = vpop.f32.mrb[0].mxu0
      %v619 = vadd.f32 %v516, %v618
      %v620 = vpop.f32.mrb[0].mxu0
      %621 = vmatprep.mubr.bf16.mxu0 0
      %622 = vmatmul.mubr.bf16.gmra.mrb[0].mxu0 %v249
      %v623 = vpop.f32.mrb[0].mxu0
      %v624 = vadd.f32 %v521, %v623
      %v625 = vpop.f32.mrb[0].mxu0
      %v626 = vpop.f32.mrb[0].mxu0
      %v627 = vadd.f32 %v524, %v626
      %v628 = vpop.f32.mrb[0].mxu0
      %629 = vmatprep.mubr.bf16.mxu0 0
      %630 = vmatmul.mubr.bf16.gmra.mrb[0].mxu0 %v252
      %v631 = vpop.f32.mrb[0].mxu0
      %v632 = vadd.f32 %v529, %v631
      %v633 = vpop.f32.mrb[0].mxu0
      %v634 = vpop.f32.mrb[0].mxu0
      %v635 = vadd.f32 %v532, %v634
      %v636 = vpop.f32.mrb[0].mxu0
      %637 = vmatprep.mubr.bf16.mxu0 0
      %638 = vmatmul.mubr.bf16.gmra.mrb[0].mxu0 %v255
      %v639 = vpop.f32.mrb[0].mxu0
      %v640 = vadd.f32 %v537, %v639
      %v641 = vpop.f32.mrb[0].mxu0
      %v642 = vpop.f32.mrb[0].mxu0
      %v643 = vadd.f32 %v540, %v642
      %v644 = vpop.f32.mrb[0].mxu0
      %645 = vmatprep.mubr.bf16.mxu0 0
      %646 = vmatmul.mubr.bf16.gmra.mrb[0].mxu0 %v258
      %v647 = vpop.f32.mrb[0].mxu0
      %v648 = vadd.f32 %v545, %v647
      %v649 = vpop.f32.mrb[0].mxu0
      %v650 = vpop.f32.mrb[0].mxu0
      %v651 = vadd.f32 %v548, %v650
      %v652 = vpop.f32.mrb[0].mxu0
      %653 = vmatprep.mubr.bf16.mxu0 0
      %654 = vmatmul.mubr.bf16.gmra.mrb[0].mxu0 %v261
      %v655 = vpop.f32.mrb[0].mxu0
      %v656 = vadd.f32 %v553, %v655
      %v657 = vpop.f32.mrb[0].mxu0
      %v658 = vpop.f32.mrb[0].mxu0
      %v659 = vadd.f32 %v556, %v658
      %v660 = vpop.f32.mrb[0].mxu0
      %661 = vmatprep.mubr.bf16.mxu0 0
      %662 = vmatmul.mubr.bf16.gmra.mrb[0].mxu0 %v264
      %v663 = vpop.f32.mrb[0].mxu0
      %v664 = vadd.f32 %v561, %v663
      %v665 = vpop.f32.mrb[0].mxu0
      %v666 = vpop.f32.mrb[0].mxu0
      %v667 = vadd.f32 %v564, %v666
      %v668 = vpop.f32.mrb[0].mxu0
      %669 = vdwg.mxu0
      %v670 = vld [vmem:[%s2] sm:$0x1]
      %v672 = vlaneseq
      %v673 = vshrl.u32 %v672, 7
      %v674 = vsub.s32 0, %v673
      %v675 = vrot.slane %v670, %v674
      %v677 = vadd.f32 %v407, %v675
      %v678 = vadd.f32 %v414, %v675
      %v679 = vadd.f32 %v421, %v675
      %v680 = vadd.f32 %v428, %v675
      %v681 = vadd.f32 %v435, %v675
      %v682 = vadd.f32 %v442, %v675
      %v683 = vadd.f32 %v449, %v675
      %v684 = vadd.f32 %v456, %v675
      %vm701 = vcmask 1046528
      %v702 = vrot.slane %v608, 1
      %v703 = vrot.slane %v611, 1
      %v704 = vsel %vm701, %v702, %v703
      %v705 = vrot.slane %v616, 1
      %v706 = vrot.slane %v619, 1
      %v707 = vsel %vm701, %v705, %v706
      %v708 = vrot.slane %v624, 1
      %v709 = vrot.slane %v627, 1
      %v710 = vsel %vm701, %v708, %v709
      %v711 = vrot.slane %v632, 1
      %v712 = vrot.slane %v635, 1
      %v713 = vsel %vm701, %v711, %v712
      %v714 = vrot.slane %v640, 1
      %v715 = vrot.slane %v643, 1
      %v716 = vsel %vm701, %v714, %v715
      %v717 = vrot.slane %v648, 1
      %v718 = vrot.slane %v651, 1
      %v719 = vsel %vm701, %v717, %v718
      %v720 = vrot.slane %v656, 1
      %v721 = vrot.slane %v659, 1
      %v722 = vsel %vm701, %v720, %v721
      %v723 = vrot.slane %v664, 1
      %v724 = vrot.slane %v667, 1
      %v725 = vsel %vm701, %v723, %v724
      %v734 = vadd.f32 %v677, %v704
      %v735 = vadd.f32 %v678, %v707
      %v736 = vadd.f32 %v679, %v710
      %v737 = vadd.f32 %v680, %v713
      %v738 = vadd.f32 %v681, %v716
      %v739 = vadd.f32 %v682, %v719
      %v740 = vadd.f32 %v683, %v722
      %v741 = vadd.f32 %v684, %v725
      %v742 = vmax.f32 %v734, 0.0
      %v743 = vmax.f32 %v735, 0.0
      %v744 = vmax.f32 %v736, 0.0
      %v745 = vmax.f32 %v737, 0.0
      %v746 = vmax.f32 %v738, 0.0
      %v747 = vmax.f32 %v739, 0.0
      %v748 = vmax.f32 %v740, 0.0
      %v749 = vmax.f32 %v741, 0.0
      %v750 = vpack.c.bf16 %v742, %v742
      %v751 = vpack.c.bf16 %v743, %v743
      %v752 = vpack.c.bf16 %v744, %v744
      %v753 = vpack.c.bf16 %v745, %v745
      %v754 = vpack.c.bf16 %v746, %v746
      %v755 = vpack.c.bf16 %v747, %v747
      %v756 = vpack.c.bf16 %v748, %v748
      %v757 = vpack.c.bf16 %v749, %v749
      %vm758 = vcmask 60416
      %759 = vst.msk [vmem:[%s170] sm:$0xf] %vm758, %v750
      %760 = vst.msk [vmem:[%s170 + $0x4] sm:$0xf] %vm758, %v751
      %761 = vst.msk [vmem:[%s170 + $0x8] sm:$0xf] %vm758, %v752
      %762 = vst.msk [vmem:[%s170 + $0xc] sm:$0xf] %vm758, %v753
      %763 = vst.msk [vmem:[%s170 + $0x10] sm:$0xf] %vm758, %v754
      %764 = vst.msk [vmem:[%s170 + $0x14] sm:$0xf] %vm758, %v755
      %765 = vst.msk [vmem:[%s170 + $0x18] sm:$0xf] %vm758, %v756
      %766 = vst.msk [vmem:[%s170 + $0x1c] sm:$0xf] %vm758, %v757
      %p767 = scmp.lt.s32.totalorder %s14, 1
      %s768 = scalar_select %p767, %s14, 1
      %s769 = smul.addr %s768, 8
      %s770 = smul.addr %s769, 4
      %s771 = scalar_lea.vmem %s3, %s770
      // Predicated region
      $region33: #{simple_backbone.2} parent=31 // pred_check
        %p772 = pneg %p100
      $region34: #{simple_backbone.2} parent=31 // pred_check_branch
        %774 = sbr.rel (%p772) target = $region36
      $region35: #{simple_backbone.2} parent=31 // pred_region
        _
      $region36: #{simple_backbone.2} parent=31 // pred_fallthru
        _
    $region32: #{simple_backbone.2} parent=5 // pred_fallthru
      _
    %p775 = scmp.le.s32.totalorder 2, %s9
    // Predicated region
    $region37: #{simple_backbone.2} parent=5 // pred_check
      %p776 = pneg %p775
    $region38: #{simple_backbone.2} parent=5 // pred_check_branch
      %778 = sbr.rel (%p776) target = $region40
    $region39: #{simple_backbone.2} parent=5 // pred_region
      %s779 = ssub.s32 %s9, 2
      // Predicated region
      $region41: #{simple_backbone.2} parent=39 // pred_check
        %p780 = pneg %p106
      $region42: #{simple_backbone.2} parent=39 // pred_check_branch
        %782 = sbr.rel (%p780) target = $region44
      $region43: #{simple_backbone.2} parent=39 // pred_region
        %p783 = scmp.lt.s32.totalorder %s15, 1
        %s784 = scalar_select %p783, %s15, 1
        %s785 = smul.addr %s784, 8
        %s786 = smul.addr %s785, 4
        %s787 = scalar_lea.vmem %s3, %s786
      $region44: #{simple_backbone.2} parent=39 // pred_fallthru
        _
    $region40: #{simple_backbone.2} parent=5 // pred_fallthru
      _
  $region6: #{simple_backbone.2} parent=0 // loop_footer
    %s13 = sadd.s32 1, %s9
  $region7: #{simple_backbone.2} parent=0 // loop_footer_branch
    %8 = sbr.rel target = $region3
  $region8: #{simple_backbone.2} parent=0 // loop_exit
    _

// kernel: simple_backbone.3
$region0: #{simple_backbone.3}
  #allocation0 [shape = 'u32[]', space=smem, size = 0x4, offset = 0x4, fixed_abs, tag = 'smem constant byte address 0x4 - core index']
  #allocation1 [shape = 'u32[144,128]{1,0:T(1,128)}', space=vmem, size = 0x12000, scoped, tag = 'internal scratch']
  %s0 = inlined_call_operand.vmem [shape: bf16[2,5,16,32], index: 0, kind: input, shape index: {}]
  %s1 = inlined_call_operand.vmem [shape: bf16[4,32,16], index: 1, kind: input, shape index: {}]
  %s2 = inlined_call_operand.vmem [shape: f32[1,16], index: 2, kind: input, shape index: {}]
  %s3 = inlined_call_operand.vmem [shape: bf16[2,4,4,16], index: 3, kind: output, shape index: {}]
  %s4 = sld [smem:[#allocation0]]
  $region45: #{simple_backbone.3} parent=0
    _
  %s6 = ssub.s32 1, %s4
  %s7 = scalar_select 0, %s6, %s4
  loop: start=0, step=1, limit=4
  $region2: #{simple_backbone.3} parent=0 // loop_pre_header
    _
  $region3: #{simple_backbone.3} parent=0 // loop_header
    %s9 = sphi 0, %s13
    %p10 = scmp.ge.s32.totalorder %s9, 4
    %s19 = sphi 0, %s21
    %s22 = sphi 0, %s19
    %s23 = sphi 0, %s22
    %s39 = sphi 0, %s23
    %s43 = sphi 0, %s43
    %s45 = sphi 0, %s43
    %s46 = sphi 0, %s45
    %s60 = sphi 0, %s46
    %s64 = sphi 0, %s64
    %s66 = sphi 0, %s64
    %s67 = sphi 0, %s66
    %s81 = sphi 0, %s67
    %s87 = sphi 0, %s89
    %s90 = sphi 0, %s87
    %s91 = sphi 0, %s90
    %s107 = sphi 0, %s91
  $region4: #{simple_backbone.3} parent=0 // loop_header_branch
    %12 = sbr.rel (%p10) target = $region8
  $region5: #{simple_backbone.3} parent=0 // loop_body
    %s14 = ssub.s32 %s9, 1
    %s15 = ssub.s32 %s9, 2
    %s16 = sadd.s32 %s9, 1
    %s17 = ssub.s32 %s9, %s16
    %p18 = scmp.eq.s32.totalorder %s17, 0
    %s20 = sadd.s32 %s19, 1
    %s21 = scalar_select %p18, %s19, %s20
    %p24 = pneg %p18
    %p25 = scmp.eq.s32.totalorder %s9, 1
    %p26 = por %p24, %p25
    %p27 = scmp.ne.s32.totalorder %s19, %s22
    %p28 = scmp.eq.s32.totalorder %s9, 0
    %p29 = por %p27, %p28
    %p30 = scmp.ne.s32.totalorder %s19, %s22
    %p31 = scmp.eq.s32.totalorder %s14, 1
    %p32 = por %p30, %p31
    %p33 = scmp.ne.s32.totalorder %s22, %s23
    %p34 = scmp.eq.s32.totalorder %s14, 0
    %p35 = por %p33, %p34
    %p36 = scmp.ne.s32.totalorder %s22, %s23
    %p37 = scmp.eq.s32.totalorder %s15, 1
    %p38 = por %p36, %p37
    %p40 = scmp.ne.s32.totalorder %s23, %s39
    %p41 = scmp.eq.s32.totalorder %s15, 0
    %p42 = por %p40, %p41
    %s44 = sadd.s32 %s43, 1
    %p47 = scmp.eq.s32.totalorder %s9, 1
    %p48 = scmp.ne.s32.totalorder %s43, %s45
    %p49 = scmp.eq.s32.totalorder %s9, 0
    %p50 = por %p48, %p49
    %p51 = scmp.ne.s32.totalorder %s43, %s45
    %p52 = scmp.eq.s32.totalorder %s14, 1
    %p53 = por %p51, %p52
    %p54 = scmp.ne.s32.totalorder %s45, %s46
    %p55 = scmp.eq.s32.totalorder %s14, 0
    %p56 = por %p54, %p55
    %p57 = scmp.ne.s32.totalorder %s45, %s46
    %p58 = scmp.eq.s32.totalorder %s15, 1
    %p59 = por %p57, %p58
    %p61 = scmp.ne.s32.totalorder %s46, %s60
    %p62 = scmp.eq.s32.totalorder %s15, 0
    %p63 = por %p61, %p62
    %s65 = sadd.s32 %s64, 1
    %p68 = scmp.eq.s32.totalorder %s9, 1
    %p69 = scmp.ne.s32.totalorder %s64, %s66
    %p70 = scmp.eq.s32.totalorder %s9, 0
    %p71 = por %p69, %p70
    %p72 = scmp.ne.s32.totalorder %s64, %s66
    %p73 = scmp.eq.s32.totalorder %s14, 1
    %p74 = por %p72, %p73
    %p75 = scmp.ne.s32.totalorder %s66, %s67
    %p76 = scmp.eq.s32.totalorder %s14, 0
    %p77 = por %p75, %p76
    %p78 = scmp.ne.s32.totalorder %s66, %s67
    %p79 = scmp.eq.s32.totalorder %s15, 1
    %p80 = por %p78, %p79
    %p82 = scmp.ne.s32.totalorder %s67, %s81
    %p83 = scmp.eq.s32.totalorder %s15, 0
    %p84 = por %p82, %p83
    %s85 = ssub.s32 %s9, %s16
    %p86 = scmp.eq.s32.totalorder %s85, 0
    %s88 = sadd.s32 %s87, 1
    %s89 = scalar_select %p86, %s87, %s88
    %p92 = pneg %p86
    %p93 = scmp.eq.s32.totalorder %s9, 1
    %p94 = por %p92, %p93
    %p95 = scmp.ne.s32.totalorder %s87, %s90
    %p96 = scmp.eq.s32.totalorder %s9, 0
    %p97 = por %p95, %p96
    %p98 = scmp.ne.s32.totalorder %s87, %s90
    %p99 = scmp.eq.s32.totalorder %s14, 1
    %p100 = por %p98, %p99
    %p101 = scmp.ne.s32.totalorder %s90, %s91
    %p102 = scmp.eq.s32.totalorder %s14, 0
    %p103 = por %p101, %p102
    %p104 = scmp.ne.s32.totalorder %s90, %s91
    %p105 = scmp.eq.s32.totalorder %s15, 1
    %p106 = por %p104, %p105
    %p108 = scmp.ne.s32.totalorder %s91, %s107
    %p109 = scmp.eq.s32.totalorder %s15, 0
    %p110 = por %p108, %p109
    %p111 = scmp.le.s32.totalorder 1, %s9
    %p112 = scmp.lt.s32.totalorder %s9, 3
    %p113 = pnand %p111, %p112
    %p114 = pneg %p113
    // Predicated region
    $region9: #{simple_backbone.3} parent=5 // pred_check
      _
    $region10: #{simple_backbone.3} parent=5 // pred_check_branch
      %116 = sbr.rel (%p113) target = $region12
    $region11: #{simple_backbone.3} parent=5 // pred_region
      %s117 = ssub.s32 %s9, 1
      // Predicated region
      $region13: #{simple_backbone.3} parent=11 // pred_check
        %p118 = pneg %p56
      $region14: #{simple_backbone.3} parent=11 // pred_check_branch
        %120 = sbr.rel (%p118) target = $region16
      $region15: #{simple_backbone.3} parent=11 // pred_region
        _
      $region16: #{simple_backbone.3} parent=11 // pred_fallthru
        _
      // Predicated region
      $region17: #{simple_backbone.3} parent=11 // pred_check
        %p121 = pneg %p77
      $region18: #{simple_backbone.3} parent=11 // pred_check_branch
        %123 = sbr.rel (%p121) target = $region20
      $region19: #{simple_backbone.3} parent=11 // pred_region
        _
      $region20: #{simple_backbone.3} parent=11 // pred_fallthru
        _
    $region12: #{simple_backbone.3} parent=5 // pred_fallthru
      _
    %p124 = scmp.lt.s32.totalorder %s9, 2
    // Predicated region
    $region21: #{simple_backbone.3} parent=5 // pred_check
      %p125 = pneg %p124
    $region22: #{simple_backbone.3} parent=5 // pred_check_branch
      %127 = sbr.rel (%p125) target = $region24
    $region23: #{simple_backbone.3} parent=5 // pred_region
      // Predicated region
      $region25: #{simple_backbone.3} parent=23 // pred_check
        %p128 = pneg %p29
      $region26: #{simple_backbone.3} parent=23 // pred_check_branch
        %130 = sbr.rel (%p128) target = $region28
      $region27: #{simple_backbone.3} parent=23 // pred_region
        %p131 = scmp.lt.s32.totalorder %s9, 1
        %s132 = scalar_select %p131, %s9, 1
        %s133 = smul.addr %s132, 10
        %s134 = smul.addr %s133, 4
        %s135 = scalar_lea.vmem %s0, %s134
      $region28: #{simple_backbone.3} parent=23 // pred_fallthru
        _
    $region24: #{simple_backbone.3} parent=5 // pred_fallthru
      _
    %p136 = scmp.le.s32.totalorder 1, %s9
    %p137 = scmp.lt.s32.totalorder %s9, 3
    %p138 = pnand %p136, %p137
    %p139 = pneg %p138
    // Predicated region
    $region29: #{simple_backbone.3} parent=5 // pred_check
      _
    $region30: #{simple_backbone.3} parent=5 // pred_check_branch
      %141 = sbr.rel (%p138) target = $region32
    $region31: #{simple_backbone.3} parent=5 // pred_region
      %s142 = ssub.s32 %s9, 1
      %p143 = scmp.lt.s32.totalorder %s14, 1
      %s144 = scalar_select %p143, %s14, 1
      %s145 = smul.addr %s144, 10
      %s146 = smul.addr %s145, 4
      %s147 = scalar_lea.vmem %s0, %s146
      %p148 = pneg %p35
      %p149 = pneg %p32
      %p150 = pneg %p56
      %p151 = pneg %p53
      %p152 = pneg %p77
      %p153 = pneg %p74
      %p154 = pneg %p103
      %p155 = pneg %p100
      %p156 = scmp.lt.s32.totalorder %s14, 1
      %s157 = scalar_select %p156, %s14, 1
      %s158 = smul.addr %s157, 4
      %s159 = smul.addr %s158, 2
      %s160 = scalar_lea.vmem %s3, %s159
      %p161 = scmp.lt.s32.totalorder %s14, 1
      %s162 = scalar_select %p161, %s14, 1
      %s163 = smul.addr %s162, 10
      %s164 = smul.addr %s163, 4
      %s165 = scalar_lea.vmem %s0, %s164
      %p166 = scmp.lt.s32.totalorder %s14, 1
      %s167 = scalar_select %p166, %s14, 1
      %s168 = smul.addr %s167, 4
      %s169 = smul.addr %s168, 2
      %s170 = scalar_lea.vmem %s3, %s169
      %v172 = vld [vmem:[%s165] sm:$0xf]
      %v173 = vld [vmem:[%s165 + $0x4] sm:$0xf]
      %v174 = vld [vmem:[%s165 + $0x8] sm:$0xf]
      %v175 = vld [vmem:[%s165 + $0xc] sm:$0xf]
      %v176 = vld [vmem:[%s165 + $0x10] sm:$0xf]
      %v177 = vld [vmem:[%s165 + $0x14] sm:$0xf]
      %v178 = vld [vmem:[%s165 + $0x18] sm:$0xf]
      %v179 = vld [vmem:[%s165 + $0x1c] sm:$0xf]
      %v180 = vld [vmem:[%s165 + $0x20] sm:$0xf]
      %v181 = vld [vmem:[%s165 + $0x24] sm:$0xf]
      %v182 = vld [vmem:[%s1] sm:$0xf]
      %v183 = vld [vmem:[%s1 + $0x4] sm:$0xf]
      %v184 = vld [vmem:[%s1 + $0x8] sm:$0xf]
      %v185 = vld [vmem:[%s1 + $0xc] sm:$0xf]
      %s186 = scalar_lea.vmem %s1, 16
      %v187 = vld [vmem:[%s186] sm:$0xf]
      %v188 = vld [vmem:[%s186 + $0x4] sm:$0xf]
      %v189 = vld [vmem:[%s186 + $0x8] sm:$0xf]
      %v190 = vld [vmem:[%s186 + $0xc] sm:$0xf]
      %s191 = scalar_lea.vmem %s1, 32
      %v192 = vld [vmem:[%s191] sm:$0xf]
      %v193 = vld [vmem:[%s191 + $0x4] sm:$0xf]
      %v194 = vld [vmem:[%s191 + $0x8] sm:$0xf]
      %v195 = vld [vmem:[%s191 + $0xc] sm:$0xf]
      %v204 = vunpack.c.l.b16 %v174
      %v205 = vunpack.c.l.b16 %v175
      %v206 = vunpack.c.l.b16 %v176
      %v207 = vunpack.c.l.b16 %v177
      %v208 = vunpack.c.l.b16 %v178
      %v209 = vunpack.c.l.b16 %v179
      %v210 = vunpack.c.l.b16 %v180
      %v211 = vunpack.c.l.b16 %v181
      %v212 = vpack.c.b16 %v205, %v204
      %v213 = vpack.c.b16 %v207, %v206
      %v214 = vpack.c.b16 %v209, %v208
      %v215 = vpack.c.b16 %v211, %v210
      %v220 = vunpack.c.l.b16 %v192
      %v221 = vunpack.c.l.b16 %v193
      %v222 = vunpack.c.l.b16 %v194
      %v223 = vunpack.c.l.b16 %v195
      %v224 = vpack.c.b16 %v221, %v220
      %v225 = vpack.c.b16 %v223, %v222
      %vm228 = vcmask 261120
      %v230 = vsel %vm228, %v212, 0
      %v233 = vsel %vm228, %v213, 0
      %v236 = vsel %vm228, %v214, 0
      %v239 = vsel %vm228, %v215, 0
      %241 = vmatprep.subr.bf16.mxu0 0
      %242 = vmatpush1.bf16.msra.mxu0 %v224
      %243 = vmatprep.subr.bf16.mxu0 0
      %244 = vmatpush1.bf16.msra.mxu0 %v225
      %245 = vmatprep.subr.bf16.mxu0 0
      %246 = vmatpush1.bf16.msra.mxu0 0
      %247 = vmatprep.subr.bf16.mxu0 0
      %248 = vmatpush1.bf16.msra.mxu0 0
      %249 = vmatprep.subr.bf16.mxu0 0
      %250 = vmatpush1.bf16.msra.mxu0 0
      %251 = vmatprep.subr.bf16.mxu0 0
      %252 = vmatpush1.bf16.msra.mxu0 0
      %253 = vmatprep.subr.bf16.mxu0 0
      %254 = vmatpush1.bf16.msra.mxu0 0
      %255 = vmatprep.subr.bf16.mxu0 0
      %256 = vmatpush1.bf16.msra.mxu0 0
      %257 = vmatprep.subr.bf16.mxu0 0
      %258 = vmatpush1.bf16.msra.mxu0 0
      %259 = vmatprep.subr.bf16.mxu0 0
      %260 = vmatpush1.bf16.msra.mxu0 0
      %261 = vmatprep.subr.bf16.mxu0 0
      %262 = vmatpush1.bf16.msra.mxu0 0
      %263 = vmatprep.subr.bf16.mxu0 0
      %264 = vmatpush1.bf16.msra.mxu0 0
      %265 = vmatprep.subr.bf16.mxu0 0
      %266 = vmatpush1.bf16.msra.mxu0 0
      %267 = vmatprep.subr.bf16.mxu0 0
      %268 = vmatpush1.bf16.msra.mxu0 0
      %269 = vmatprep.subr.bf16.mxu0 0
      %270 = vmatpush1.bf16.msra.mxu0 0
      %271 = vmatprep.subr.bf16.mxu0 0
      %272 = vmatpush1.bf16.msra.mxu0 0
      %273 = vmatprep.mubr.bf16.mxu0 0
      %274 = vmatmul.mubr.bf16.gmra.mrb[0].mxu0 %v230
      %v275 = vpop.f32.mrb[0].mxu0
      %v276 = vadd.f32 0.0, %v275
      %v277 = vpop.f32.mrb[0].mxu0
      %v278 = vpop.f32.mrb[0].mxu0
      %v279 = vpop.f32.mrb[0].mxu0
      %280 = vmatprep.mubr.bf16.mxu0 0
      %281 = vmatmul.mubr.bf16.gmra.mrb[0].mxu0 %v233
      %v282 = vpop.f32.mrb[0].mxu0
      %v283 = vadd.f32 0.0, %v282
      %v284 = vpop.f32.mrb[0].mxu0
      %v285 = vpop.f32.mrb[0].mxu0
      %v286 = vpop.f32.mrb[0].mxu0
      %287 = vmatprep.mubr.bf16.mxu0 0
      %288 = vmatmul.mubr.bf16.gmra.mrb[0].mxu0 %v236
      %v289 = vpop.f32.mrb[0].mxu0
      %v290 = vadd.f32 0.0, %v289
      %v291 = vpop.f32.mrb[0].mxu0
      %v292 = vpop.f32.mrb[0].mxu0
      %v293 = vpop.f32.mrb[0].mxu0
      %294 = vmatprep.mubr.bf16.mxu0 0
      %295 = vmatmul.mubr.bf16.gmra.mrb[0].mxu0 %v239
      %v296 = vpop.f32.mrb[0].mxu0
      %v297 = vadd.f32 0.0, %v296
      %v298 = vpop.f32.mrb[0].mxu0
      %v299 = vpop.f32.mrb[0].mxu0
      %v300 = vpop.f32.mrb[0].mxu0
      %301 = vdwg.mxu0
      %v304 = vunpack.c.l.b16 %v172
      %v305 = vunpack.c.l.b16 %v173
      %v306 = vpack.c.b16 %v305, %v304
      %v311 = vunpack.c.l.b16 %v182
      %v312 = vunpack.c.l.b16 %v183
      %v313 = vunpack.c.l.b16 %v184
      %v314 = vunpack.c.l.b16 %v185
      %v315 = vpack.c.b16 %v312, %v311
      %v316 = vpack.c.b16 %v314, %v313
      %v320 = vsel %vm228, %v306, 0
      %322 = vmatprep.subr.bf16.mxu0 0
      %323 = vmatpush1.bf16.msra.mxu0 %v315
      %324 = vmatprep.subr.bf16.mxu0 0
      %325 = vmatpush1.bf16.msra.mxu0 %v316
      %326 = vmatprep.subr.bf16.mxu0 0
      %327 = vmatpush1.bf16.msra.mxu0 0
      %328 = vmatprep.subr.bf16.mxu0 0
      %329 = vmatpush1.bf16.msra.mxu0 0
      %330 = vmatprep.subr.bf16.mxu0 0
      %331 = vmatpush1.bf16.msra.mxu0 0
      %332 = vmatprep.subr.bf16.mxu0 0
      %333 = vmatpush1.bf16.msra.mxu0 0
      %334 = vmatprep.subr.bf16.mxu0 0
      %335 = vmatpush1.bf16.msra.mxu0 0
      %336 = vmatprep.subr.bf16.mxu0 0
      %337 = vmatpush1.bf16.msra.mxu0 0
      %338 = vmatprep.subr.bf16.mxu0 0
      %339 = vmatpush1.bf16.msra.mxu0 0
      %340 = vmatprep.subr.bf16.mxu0 0
      %341 = vmatpush1.bf16.msra.mxu0 0
      %342 = vmatprep.subr.bf16.mxu0 0
      %343 = vmatpush1.bf16.msra.mxu0 0
      %344 = vmatprep.subr.bf16.mxu0 0
      %345 = vmatpush1.bf16.msra.mxu0 0
      %346 = vmatprep.subr.bf16.mxu0 0
      %347 = vmatpush1.bf16.msra.mxu0 0
      %348 = vmatprep.subr.bf16.mxu0 0
      %349 = vmatpush1.bf16.msra.mxu0 0
      %350 = vmatprep.subr.bf16.mxu0 0
      %351 = vmatpush1.bf16.msra.mxu0 0
      %352 = vmatprep.subr.bf16.mxu0 0
      %353 = vmatpush1.bf16.msra.mxu0 0
      %354 = vmatprep.mubr.bf16.mxu0 0
      %355 = vmatmul.mubr.bf16.gmra.mrb[0].mxu0 %v320
      %v356 = vpop.f32.mrb[0].mxu0
      %v357 = vadd.f32 %v276, %v356
      %v358 = vpop.f32.mrb[0].mxu0
      %v359 = vpop.f32.mrb[0].mxu0
      %v360 = vpop.f32.mrb[0].mxu0
      %361 = vmatprep.mubr.bf16.mxu0 0
      %362 = vmatmul.mubr.bf16.gmra.mrb[0].mxu0 %v230
      %v363 = vpop.f32.mrb[0].mxu0
      %v364 = vadd.f32 %v283, %v363
      %v365 = vpop.f32.mrb[0].mxu0
      %v366 = vpop.f32.mrb[0].mxu0
      %v367 = vpop.f32.mrb[0].mxu0
      %368 = vmatprep.mubr.bf16.mxu0 0
      %369 = vmatmul.mubr.bf16.gmra.mrb[0].mxu0 %v233
      %v370 = vpop.f32.mrb[0].mxu0
      %v371 = vadd.f32 %v290, %v370
      %v372 = vpop.f32.mrb[0].mxu0
      %v373 = vpop.f32.mrb[0].mxu0
      %v374 = vpop.f32.mrb[0].mxu0
      %375 = vmatprep.mubr.bf16.mxu0 0
      %376 = vmatmul.mubr.bf16.gmra.mrb[0].mxu0 %v236
      %v377 = vpop.f32.mrb[0].mxu0
      %v378 = vadd.f32 %v297, %v377
      %v379 = vpop.f32.mrb[0].mxu0
      %v380 = vpop.f32.mrb[0].mxu0
      %v381 = vpop.f32.mrb[0].mxu0
      %382 = vdwg.mxu0
      %s383 = scalar_lea.vmem %s1, 48
      %v384 = vld [vmem:[%s383] sm:$0xf]
      %v385 = vld [vmem:[%s383 + $0x4] sm:$0xf]
      %v386 = vld [vmem:[%s383 + $0x8] sm:$0xf]
      %v387 = vld [vmem:[%s383 + $0xc] sm:$0xf]
      %v392 = vunpack.c.l.b16 %v384
      %v393 = vunpack.c.l.b16 %v385
      %v394 = vunpack.c.l.b16 %v386
      %v395 = vunpack.c.l.b16 %v387
      %v396 = vpack.c.b16 %v393, %v392
      %v397 = vpack.c.b16 %v395, %v394
      %400 = vmatprep.subr.bf16.mxu0 0
      %401 = vmatpush1.bf16.msra.mxu0 %v396
      %402 = vmatprep.subr.bf16.mxu0 0
      %403 = vmatpush1.bf16.msra.mxu0 %v397
      %404 = vmatprep.subr.bf16.mxu0 0
      %405 = vmatpush1.bf16.msra.mxu0 0
      %406 = vmatprep.subr.bf16.mxu0 0
      %407 = vmatpush1.bf16.msra.mxu0 0
      %408 = vmatprep.subr.bf16.mxu0 0
      %409 = vmatpush1.bf16.msra.mxu0 0
      %410 = vmatprep.subr.bf16.mxu0 0
      %411 = vmatpush1.bf16.msra.mxu0 0
      %412 = vmatprep.subr.bf16.mxu0 0
      %413 = vmatpush1.bf16.msra.mxu0 0
      %414 = vmatprep.subr.bf16.mxu0 0
      %415 = vmatpush1.bf16.msra.mxu0 0
      %416 = vmatprep.subr.bf16.mxu0 0
      %417 = vmatpush1.bf16.msra.mxu0 0
      %418 = vmatprep.subr.bf16.mxu0 0
      %419 = vmatpush1.bf16.msra.mxu0 0
      %420 = vmatprep.subr.bf16.mxu0 0
      %421 = vmatpush1.bf16.msra.mxu0 0
      %422 = vmatprep.subr.bf16.mxu0 0
      %423 = vmatpush1.bf16.msra.mxu0 0
      %424 = vmatprep.subr.bf16.mxu0 0
      %425 = vmatpush1.bf16.msra.mxu0 0
      %426 = vmatprep.subr.bf16.mxu0 0
      %427 = vmatpush1.bf16.msra.mxu0 0
      %428 = vmatprep.subr.bf16.mxu0 0
      %429 = vmatpush1.bf16.msra.mxu0 0
      %430 = vmatprep.subr.bf16.mxu0 0
      %431 = vmatpush1.bf16.msra.mxu0 0
      %432 = vmatprep.mubr.bf16.mxu0 0
      %433 = vmatmul.mubr.bf16.gmra.mrb[0].mxu0 %v230
      %v434 = vpop.f32.mrb[0].mxu0
      %v435 = vadd.f32 0.0, %v434
      %v436 = vpop.f32.mrb[0].mxu0
      %v437 = vpop.f32.mrb[0].mxu0
      %v438 = vpop.f32.mrb[0].mxu0
      %439 = vmatprep.mubr.bf16.mxu0 0
      %440 = vmatmul.mubr.bf16.gmra.mrb[0].mxu0 %v233
      %v441 = vpop.f32.mrb[0].mxu0
      %v442 = vadd.f32 0.0, %v441
      %v443 = vpop.f32.mrb[0].mxu0
      %v444 = vpop.f32.mrb[0].mxu0
      %v445 = vpop.f32.mrb[0].mxu0
      %446 = vmatprep.mubr.bf16.mxu0 0
      %447 = vmatmul.mubr.bf16.gmra.mrb[0].mxu0 %v236
      %v448 = vpop.f32.mrb[0].mxu0
      %v449 = vadd.f32 0.0, %v448
      %v450 = vpop.f32.mrb[0].mxu0
      %v451 = vpop.f32.mrb[0].mxu0
      %v452 = vpop.f32.mrb[0].mxu0
      %453 = vmatprep.mubr.bf16.mxu0 0
      %454 = vmatmul.mubr.bf16.gmra.mrb[0].mxu0 %v239
      %v455 = vpop.f32.mrb[0].mxu0
      %v456 = vadd.f32 0.0, %v455
      %v457 = vpop.f32.mrb[0].mxu0
      %v458 = vpop.f32.mrb[0].mxu0
      %v459 = vpop.f32.mrb[0].mxu0
      %460 = vdwg.mxu0
      %v465 = vunpack.c.l.b16 %v187
      %v466 = vunpack.c.l.b16 %v188
      %v467 = vunpack.c.l.b16 %v189
      %v468 = vunpack.c.l.b16 %v190
      %v469 = vpack.c.b16 %v466, %v465
      %v470 = vpack.c.b16 %v468, %v467
      %473 = vmatprep.subr.bf16.mxu0 0
      %474 = vmatpush1.bf16.msra.mxu0 %v469
      %475 = vmatprep.subr.bf16.mxu0 0
      %476 = vmatpush1.bf16.msra.mxu0 %v470
      %477 = vmatprep.subr.bf16.mxu0 0
      %478 = vmatpush1.bf16.msra.mxu0 0
      %479 = vmatprep.subr.bf16.mxu0 0
      %480 = vmatpush1.bf16.msra.mxu0 0
      %481 = vmatprep.subr.bf16.mxu0 0
      %482 = vmatpush1.bf16.msra.mxu0 0
      %483 = vmatprep.subr.bf16.mxu0 0
      %484 = vmatpush1.bf16.msra.mxu0 0
      %485 = vmatprep.subr.bf16.mxu0 0
      %486 = vmatpush1.bf16.msra.mxu0 0
      %487 = vmatprep.subr.bf16.mxu0 0
      %488 = vmatpush1.bf16.msra.mxu0 0
      %489 = vmatprep.subr.bf16.mxu0 0
      %490 = vmatpush1.bf16.msra.mxu0 0
      %491 = vmatprep.subr.bf16.mxu0 0
      %492 = vmatpush1.bf16.msra.mxu0 0
      %493 = vmatprep.subr.bf16.mxu0 0
      %494 = vmatpush1.bf16.msra.mxu0 0
      %495 = vmatprep.subr.bf16.mxu0 0
      %496 = vmatpush1.bf16.msra.mxu0 0
      %497 = vmatprep.subr.bf16.mxu0 0
      %498 = vmatpush1.bf16.msra.mxu0 0
      %499 = vmatprep.subr.bf16.mxu0 0
      %500 = vmatpush1.bf16.msra.mxu0 0
      %501 = vmatprep.subr.bf16.mxu0 0
      %502 = vmatpush1.bf16.msra.mxu0 0
      %503 = vmatprep.subr.bf16.mxu0 0
      %504 = vmatpush1.bf16.msra.mxu0 0
      %505 = vmatprep.mubr.bf16.mxu0 0
      %506 = vmatmul.mubr.bf16.gmra.mrb[0].mxu0 %v320
      %v507 = vpop.f32.mrb[0].mxu0
      %v508 = vadd.f32 %v435, %v507
      %v509 = vpop.f32.mrb[0].mxu0
      %v510 = vpop.f32.mrb[0].mxu0
      %v511 = vpop.f32.mrb[0].mxu0
      %512 = vmatprep.mubr.bf16.mxu0 0
      %513 = vmatmul.mubr.bf16.gmra.mrb[0].mxu0 %v230
      %v514 = vpop.f32.mrb[0].mxu0
      %v515 = vadd.f32 %v442, %v514
      %v516 = vpop.f32.mrb[0].mxu0
      %v517 = vpop.f32.mrb[0].mxu0
      %v518 = vpop.f32.mrb[0].mxu0
      %519 = vmatprep.mubr.bf16.mxu0 0
      %520 = vmatmul.mubr.bf16.gmra.mrb[0].mxu0 %v233
      %v521 = vpop.f32.mrb[0].mxu0
      %v522 = vadd.f32 %v449, %v521
      %v523 = vpop.f32.mrb[0].mxu0
      %v524 = vpop.f32.mrb[0].mxu0
      %v525 = vpop.f32.mrb[0].mxu0
      %526 = vmatprep.mubr.bf16.mxu0 0
      %527 = vmatmul.mubr.bf16.gmra.mrb[0].mxu0 %v236
      %v528 = vpop.f32.mrb[0].mxu0
      %v529 = vadd.f32 %v456, %v528
      %v530 = vpop.f32.mrb[0].mxu0
      %v531 = vpop.f32.mrb[0].mxu0
      %v532 = vpop.f32.mrb[0].mxu0
      %533 = vdwg.mxu0
      %v534 = vld [vmem:[%s2] sm:$0x1]
      %v536 = vlaneseq
      %v537 = vshrl.u32 %v536, 7
      %v538 = vsub.s32 0, %v537
      %v539 = vrot.slane %v534, %v538
      %v541 = vadd.f32 %v357, %v539
      %v542 = vadd.f32 %v364, %v539
      %v543 = vadd.f32 %v371, %v539
      %v544 = vadd.f32 %v378, %v539
      %v549 = vrot.slane %v508, 1
      %v550 = vrot.slane %v515, 1
      %v551 = vrot.slane %v522, 1
      %v552 = vrot.slane %v529, 1
      %v557 = vadd.f32 %v541, %v549
      %v558 = vadd.f32 %v542, %v550
      %v559 = vadd.f32 %v543, %v551
      %v560 = vadd.f32 %v544, %v552
      %v561 = vmax.f32 %v557, 0.0
      %v562 = vmax.f32 %v558, 0.0
      %v563 = vmax.f32 %v559, 0.0
      %v564 = vmax.f32 %v560, 0.0
      %v565 = vpack.c.bf16 %v561, %v561
      %v566 = vpack.c.bf16 %v562, %v562
      %v567 = vpack.c.bf16 %v563, %v563
      %v568 = vpack.c.bf16 %v564, %v564
      %vm569 = vcmask 123904
      %570 = vst.msk [vmem:[%s170] sm:$0x3] %vm569, %v565
      %571 = vst.msk [vmem:[%s170 + $0x2] sm:$0x3] %vm569, %v566
      %572 = vst.msk [vmem:[%s170 + $0x4] sm:$0x3] %vm569, %v567
      %573 = vst.msk [vmem:[%s170 + $0x6] sm:$0x3] %vm569, %v568
      %p574 = scmp.lt.s32.totalorder %s14, 1
      %s575 = scalar_select %p574, %s14, 1
      %s576 = smul.addr %s575, 4
      %s577 = smul.addr %s576, 2
      %s578 = scalar_lea.vmem %s3, %s577
      // Predicated region
      $region33: #{simple_backbone.3} parent=31 // pred_check
        %p579 = pneg %p100
      $region34: #{simple_backbone.3} parent=31 // pred_check_branch
        %581 = sbr.rel (%p579) target = $region36
      $region35: #{simple_backbone.3} parent=31 // pred_region
        _
      $region36: #{simple_backbone.3} parent=31 // pred_fallthru
        _
    $region32: #{simple_backbone.3} parent=5 // pred_fallthru
      _
    %p582 = scmp.le.s32.totalorder 2, %s9
    // Predicated region
    $region37: #{simple_backbone.3} parent=5 // pred_check
      %p583 = pneg %p582
    $region38: #{simple_backbone.3} parent=5 // pred_check_branch
      %585 = sbr.rel (%p583) target = $region40
    $region39: #{simple_backbone.3} parent=5 // pred_region
      %s586 = ssub.s32 %s9, 2
      // Predicated region
      $region41: #{simple_backbone.3} parent=39 // pred_check
        %p587 = pneg %p106
      $region42: #{simple_backbone.3} parent=39 // pred_check_branch
        %589 = sbr.rel (%p587) target = $region44
      $region43: #{simple_backbone.3} parent=39 // pred_region
        %p590 = scmp.lt.s32.totalorder %s15, 1
        %s591 = scalar_select %p590, %s15, 1
        %s592 = smul.addr %s591, 4
        %s593 = smul.addr %s592, 2
        %s594 = scalar_lea.vmem %s3, %s593
      $region44: #{simple_backbone.3} parent=39 // pred_fallthru
        _
    $region40: #{simple_backbone.3} parent=5 // pred_fallthru
      _
  $region6: #{simple_backbone.3} parent=0 // loop_footer
    %s13 = sadd.s32 1, %s9
  $region7: #{simple_backbone.3} parent=0 // loop_footer_branch
    %8 = sbr.rel target = $region3
  $region8: #{simple_backbone.3} parent=0 // loop_exit
    _

</llo_original>
